<compile_context>
chip_gen: v7x
topology: tpu7x:2x2x1
jax: 0.10.0
libtpu: 0.0.40
codegen_flags: <defaults>
</compile_context>

<pallas_src>
import jax
import jax.numpy as jnp
from jax.experimental import pallas as pl
from jax.experimental.pallas import tpu as pltpu

NUM_LAYERS = 3


# ---------------------------------------------------------------------------
# Kernel
# ---------------------------------------------------------------------------
def _ggnn_kernel(x_ref, adj_ref, w_in_ref, b_in_ref, w_c_ref, b_f_ref, out_ref):
    """One packed graph-group per grid step.

    Transposed / lane-dense layout: channels on sublanes, node rows on lanes.
      x_ref   : (C_in, M)   bf16
      adj_ref : (M, M)      bf16   A^T  (adj_t[src, dst] = multiplicity src->dst)
      w_in_ref: (C, C_in)   bf16   lin_in weight (PyTorch layout)
      b_in_ref: (C, 1)      f32
      w_c_ref : (L, 8C, C)  bf16   fused per-layer GRU weight (see prepare_kernel_params)
      b_f_ref : (4C, 1)     f32    fused bias [b_ih_r+b_hh_r | b_ih_z+b_hh_z | b_ih_n | b_hh_n]
      out_ref : (C, M)      f32
    All matmuls are bf16 x bf16 -> f32 on the MXU; activations/accumulators stay f32.
    """
    c, _ = out_ref.shape

    # lin_in: h = W_lin @ x + b_lin   (implicit lane broadcast of the (C,1) bias)
    h = jnp.dot(w_in_ref[...], x_ref[...], preferred_element_type=jnp.float32)
    h = h + b_in_ref[...]                               # (C, M) f32

    adj_t = adj_ref[...]                                # (M, M) bf16
    b_f = b_f_ref[...]                                  # (4C, 1) f32

    for layer in range(NUM_LAYERS):
        h16 = h.astype(jnp.bfloat16)

        # One fused h-side matmul: rows [0:4C] multiply the adjacency (A-side gate
        # pre-acts, with W_edge folded into W_ih); rows [4C:8C] are the h-side (W_hh)
        # gate pre-acts.  (8C, C) @ (C, M) -> (8C, M); 256 output rows fill the
        # v6e/v7x MXU and the row slice at 4C=128 is vreg-aligned (no relayout).
        tg = jnp.dot(w_c_ref[layer], h16, preferred_element_type=jnp.float32)  # (8C, M)

        # sum-aggregation over incoming edges: (A @ t)^T = t^T @ A^T
        t16 = tg[: 4 * c, :].astype(jnp.bfloat16)
        g = jnp.dot(t16, adj_t, preferred_element_type=jnp.float32)            # (4C, M)
        g = g + tg[4 * c:, :] + b_f
        # g rows: [0:2C] = r/z pre-acts, [2C:3C] = gi_n + b_in, [3C:4C] = gh_n + b_hn

        rz = jax.nn.sigmoid(g[: 2 * c, :])              # one packed sigmoid, full 128 lanes
        r = rz[:c, :]
        z = rz[c: 2 * c, :]
        n = jnp.tanh(g[2 * c: 3 * c, :] + r * g[3 * c: 4 * c, :])
        h = (1.0 - z) * n + z * h                       # GRUCell update (f32, full lanes)

    out_ref[...] = h.astype(out_ref.dtype)              # (C, M): unmasked 128-lane store


# ---------------------------------------------------------------------------
# Wrapper
# ---------------------------------------------------------------------------
def ggnn_forward(x_g, adj_g, kparams):
    """x_g: (G, C_in, M) grouped, nodes-on-lanes.  adj_g: (G, M, M) block-diagonal A^T.

    Returns (G, C, M) f32 in the same transposed layout."""
    x_g = x_g.astype(jnp.bfloat16)
    adj_g = adj_g.astype(jnp.bfloat16)
    groups, c_in, m = x_g.shape
    c = kparams["w_in"].shape[0]
    n_layers = kparams["w_c"].shape[0]

    # VMEM budget from actual block bytes (double-buffered streams + resident weights)
    bytes_x = c_in * m * 2
    bytes_adj = m * m * 2
    bytes_out = c * m * 4
    bytes_w = c * c_in * 2 + n_layers * 8 * c * c * 2 + 5 * c * 4
    vmem_limit = int(2 * (bytes_x + bytes_adj + bytes_out) + bytes_w + (4 << 20))

    # Advisory cost for XLA's scheduler around this small, latency-bound call.
    flops = groups * (2 * c * c_in * m
                      + n_layers * (2 * (8 * c) * c * m + 2 * (4 * c) * m * m))
    cost = pl.CostEstimate(
        flops=int(flops),
        transcendentals=int(groups * n_layers * 3 * c * m),
        bytes_accessed=int(groups * (bytes_x + bytes_adj + bytes_out) + bytes_w))

    return pl.pallas_call(
        _ggnn_kernel,
        out_shape=jax.ShapeDtypeStruct((groups, c, m), jnp.float32),
        grid_spec=pltpu.PrefetchScalarGridSpec(
            num_scalar_prefetch=0,
            grid=(groups,),
            in_specs=[
                pl.BlockSpec((None, c_in, m), lambda i: (i, 0, 0)),        # x (per group)
                pl.BlockSpec((None, m, m), lambda i: (i, 0, 0)),           # adj^T (per group)
                pl.BlockSpec((c, c_in), lambda i: (0, 0)),                 # lin_in weight (resident)
                pl.BlockSpec((c, 1), lambda i: (0, 0)),                    # lin_in bias
                pl.BlockSpec((n_layers, 8 * c, c), lambda i: (0, 0, 0)),   # fused GRU weight
                pl.BlockSpec((4 * c, 1), lambda i: (0, 0)),                # fused GRU bias
            ],
            out_specs=pl.BlockSpec((None, c, m), lambda i: (i, 0, 0)),
        ),
        compiler_params=pltpu.CompilerParams(
            dimension_semantics=("parallel",),   # groups are independent -> both v7x TCs
            vmem_limit_bytes=vmem_limit,
        ),
        cost_estimate=cost,
    )(x_g, adj_g, kparams["w_in"], kparams["b_in"], kparams["w_c"], kparams["b_f"])


# ---------------------------------------------------------------------------
# Parameter construction / packing
# ---------------------------------------------------------------------------
def make_params(key, in_channels, out_channels):
    """Deterministic synthetic parameters in PyTorch shapes."""
    ks = jax.random.split(key, 7)
    s = 0.1
    return {
        "w_lin": s * jax.random.normal(ks[0], (out_channels, in_channels), jnp.float32),
        "b_lin": s * jax.random.normal(ks[1], (out_channels,), jnp.float32),
        "w_edge": s * jax.random.normal(ks[2], (NUM_LAYERS, out_channels, out_channels), jnp.float32),
        "w_ih": s * jax.random.normal(ks[3], (3 * out_channels, out_channels), jnp.float32),
        "w_hh": s * jax.random.normal(ks[4], (3 * out_channels, out_channels), jnp.float32),
        "b_ih": s * jax.random.normal(ks[5], (3 * out_channels,), jnp.float32),
        "b_hh": s * jax.random.normal(ks[6], (3 * out_channels,), jnp.float32),
    }


def prepare_kernel_params(p, compute_dtype=jnp.bfloat16):
    """Pack/fold the weights for the kernel's transposed, fused layout.

    Per layer l the aggregation path is  gi = A @ (h @ (W_edge[l] @ W_ih^T)) + b_ih
    (edge weight folded into W_ih) and the hidden path is gh = h @ W_hh^T + b_hh.
    Both h-side matmuls are stacked into one (C, 8C) weight whose output columns are
        [ gi r/z | gi_n | 0 | gh r/z | 0 | gh_n ]
    so a single MXU launch per layer produces both the block that feeds the adjacency
    matmul (first 4C) and the block added afterwards (last 4C).  Stored transposed
    (8C, C) for the channels-on-sublanes kernel layout.
    """
    c = p["w_lin"].shape[0]
    n_layers = p["w_edge"].shape[0]
    w_ih_t = p["w_ih"].T                                    # (C, 3C), columns [r|z|n]
    w_hh_t = p["w_hh"].T                                    # (C, 3C)

    we_ih = jnp.einsum("lab,bc->lac", p["w_edge"], w_ih_t)  # (L, C, 3C)
    zeros_lcc = jnp.zeros((n_layers, c, c), jnp.float32)
    w_top = jnp.concatenate([we_ih[:, :, : 2 * c], we_ih[:, :, 2 * c:], zeros_lcc], axis=2)
    w_bot = jnp.concatenate(
        [w_hh_t[:, : 2 * c], jnp.zeros((c, c), jnp.float32), w_hh_t[:, 2 * c:]], axis=1)
    w_bot = jnp.broadcast_to(w_bot[None], (n_layers, c, 4 * c))
    w_comb = jnp.concatenate([w_top, w_bot], axis=2)        # (L, C, 8C)

    b_f = jnp.concatenate([p["b_ih"][: 2 * c] + p["b_hh"][: 2 * c],
                           p["b_ih"][2 * c:], p["b_hh"][2 * c:]])

    return {
        "w_in": p["w_lin"].astype(compute_dtype),                        # (C, C_in)  bf16
        "b_in": p["b_lin"].reshape(c, 1).astype(jnp.float32),            # (C, 1)     f32
        "w_c": jnp.transpose(w_comb, (0, 2, 1)).astype(compute_dtype),   # (L, 8C, C) bf16
        "b_f": b_f.reshape(4 * c, 1).astype(jnp.float32),                # (4C, 1)    f32
    }


# ---------------------------------------------------------------------------
# Pure-JAX reference (mirrors the PyTorch / PyG forward in f32, node-major)
# ---------------------------------------------------------------------------
def ggnn_reference(x, adj, p):
    h = x @ p["w_lin"].T + p["b_lin"]
    c = h.shape[-1]
    w_ih_t, w_hh_t = p["w_ih"].T, p["w_hh"].T
    for layer in range(NUM_LAYERS):
        m = h @ p["w_edge"][layer]
        agg = adj @ m
        gi = agg @ w_ih_t + p["b_ih"]
        gh = h @ w_hh_t + p["b_hh"]
        r = jax.nn.sigmoid(gi[:, :c] + gh[:, :c])
        z = jax.nn.sigmoid(gi[:, c: 2 * c] + gh[:, c: 2 * c])
        n = jnp.tanh(gi[:, 2 * c:] + r * gh[:, 2 * c:])
        h = (1.0 - z) * n + z * h
    return h


def edge_index_to_adj(edge_index, num_nodes):
    """edge_index: (2, E) int32, row 0 = source, row 1 = target (PyG convention)."""
    src, dst = edge_index[0], edge_index[1]
    adj = jnp.zeros((num_nodes, num_nodes), jnp.float32)
    return adj.at[dst, src].add(1.0)   # A[dst, src] = #edges src->dst


# ---------------------------------------------------------------------------
if __name__ == "__main__":
    key = jax.random.PRNGKey(0)
    k_x, k_p = jax.random.split(key)

    # embedding(32) + mutation_pca(15) + depth(1) = 48 input features
    num_nodes = 64
    in_channels = 48
    out_channels = 32
    batch = 4                # 4 independent graphs
    graphs_per_group = 2     # 2 x 64 = 128 real node rows per grid step; 2 parallel steps

    x = jax.random.normal(k_x, (batch, num_nodes, in_channels), jnp.float32)

    # deterministic synthetic graphs: ring i->i+1 plus per-graph skip edges i->i+k
    idx = jnp.arange(num_nodes, dtype=jnp.int32)
    adjs = []
    for b in range(batch):
        skip = 2 + b
        src = jnp.concatenate([idx, idx])
        dst = jnp.concatenate([(idx + 1) % num_nodes, (idx + skip) % num_nodes])
        edge_index = jnp.stack([src, dst], axis=0)               # (2, E = 128)
        adjs.append(edge_index_to_adj(edge_index, num_nodes))
    adj = jnp.stack(adjs, axis=0)                                # (B, N, N) f32, A[dst, src]

    params = make_params(k_p, in_channels, out_channels)
    kparams = prepare_kernel_params(params)

    # --- group packing glue (no zero-row padding: every row is a real node) --------
    assert batch % graphs_per_group == 0
    groups = batch // graphs_per_group
    m_rows = graphs_per_group * num_nodes                        # 128

    # nodes-on-lanes layout: (B, N, C_in) -> (G, C_in, M), graphs of a group
    # concatenated along the node (lane) axis
    x_t = jnp.transpose(x, (0, 2, 1)).reshape(groups, graphs_per_group, in_channels, num_nodes)
    x_g = jnp.transpose(x_t, (0, 2, 1, 3)).reshape(groups, in_channels, m_rows)

    # block-diagonal transposed adjacency per group: A_g^T[src, dst]
    adj_t = jnp.transpose(adj, (0, 2, 1)).reshape(groups, graphs_per_group, num_nodes, num_nodes)
    adj_g = jnp.zeros((groups, m_rows, m_rows), jnp.float32)
    for j in range(graphs_per_group):
        sl = slice(j * num_nodes, (j + 1) * num_nodes)
        adj_g = adj_g.at[:, sl, sl].set(adj_t[:, j])

    # TODO(synk): for graphs with thousands of nodes add a src-node ("arbitrary") grid
    # axis that tiles adj_g with a VMEM accumulator (and int8/fp8 adjacency storage) so
    # the O(N^2) adjacency block stays under v7x's 64 MiB VMEM; unnecessary here.

    out_g = ggnn_forward(x_g, adj_g, kparams)                    # (G, C, M) f32
    out_g = jax.block_until_ready(out_g)

    # unpack back to (B, N, C)
    out = out_g.reshape(groups, out_channels, graphs_per_group, num_nodes)
    out = jnp.transpose(out, (0, 2, 3, 1)).reshape(batch, num_nodes, out_channels)

    ref = jnp.stack([ggnn_reference(x[b], adj[b], params) for b in range(batch)], axis=0)
    assert out.shape == (batch, num_nodes, out_channels)
    max_err = float(jnp.max(jnp.abs(out - ref)))
    # kernel matmuls use bf16 operands (f32 accumulation) vs. the pure-f32 reference
    assert jnp.allclose(out, ref, rtol=5e-2, atol=5e-2), \
        f"mismatch vs JAX reference (max |err| = {max_err})"
    print("KERNEL_OK")
</pallas_src>

<mosaic_0001>
module attributes {stable_mosaic.version = 11 : i64} {
  func.func @_ggnn_kernel(%arg0: i32, %arg1: memref<1x48x128xbf16, #tpu.memory_space<vmem>>, %arg2: memref<1x128x128xbf16, #tpu.memory_space<vmem>>, %arg3: memref<32x48xbf16, #tpu.memory_space<vmem>>, %arg4: memref<32x1xf32, #tpu.memory_space<vmem>>, %arg5: memref<3x256x32xbf16, #tpu.memory_space<vmem>>, %arg6: memref<128x1xf32, #tpu.memory_space<vmem>>, %arg7: memref<1x32x128xf32, #tpu.memory_space<vmem>>) attributes {dimension_semantics = [#tpu.dimension_semantics<parallel>], iteration_bounds = array<i64: 2>, scalar_prefetch = 0 : i64, scratch_operands = 0 : i64, tpu.core_type = #tpu.core_type<tc>, window_params = [{transform_indices = @transform_0, window_bounds = array<i64: 1, 48, 128>}, {transform_indices = @transform_1, window_bounds = array<i64: 1, 128, 128>}, {pipeline_mode = #tpu.pipeline_mode<synchronous>, transform_indices = @transform_2, window_bounds = array<i64: 32, 48>}, {pipeline_mode = #tpu.pipeline_mode<synchronous>, transform_indices = @transform_3, window_bounds = array<i64: 32, 1>}, {pipeline_mode = #tpu.pipeline_mode<synchronous>, transform_indices = @transform_4, window_bounds = array<i64: 3, 256, 32>}, {pipeline_mode = #tpu.pipeline_mode<synchronous>, transform_indices = @transform_5, window_bounds = array<i64: 128, 1>}, {transform_indices = @transform_6, window_bounds = array<i64: 1, 32, 128>}]} {
    %c0 = arith.constant 0 : index
    %c0_0 = arith.constant 0 : index
    %0 = vector.load %arg3[%c0, %c0_0] : memref<32x48xbf16, #tpu.memory_space<vmem>>, vector<32x48xbf16>
    %c0_1 = arith.constant 0 : index
    %c0_2 = arith.constant 0 : index
    %c0_3 = arith.constant 0 : index
    %1 = vector.load %arg1[%c0_1, %c0_2, %c0_3] : memref<1x48x128xbf16, #tpu.memory_space<vmem>>, vector<1x48x128xbf16>
    %2 = vector.shape_cast %1 : vector<1x48x128xbf16> to vector<48x128xbf16>
    %cst = arith.constant dense<0.000000e+00> : vector<32x128xf32>
    %3 = tpu.matmul %0, %2, %cst {dimension_numbers = #tpu.dot_dimension_numbers<[1], [0], [0], [1], [0, 0, 1, 1], [], []>} : vector<32x48xbf16>, vector<48x128xbf16>, vector<32x128xf32> -> vector<32x128xf32>
    %c0_4 = arith.constant 0 : index
    %c0_5 = arith.constant 0 : index
    %4 = vector.load %arg4[%c0_4, %c0_5] : memref<32x1xf32, #tpu.memory_space<vmem>>, vector<32x1xf32>
    %5 = vector.broadcast %4 : vector<32x1xf32> to vector<32x128xf32>
    %6 = arith.addf %3, %5 : vector<32x128xf32>
    %c0_6 = arith.constant 0 : index
    %c0_7 = arith.constant 0 : index
    %c0_8 = arith.constant 0 : index
    %7 = vector.load %arg2[%c0_6, %c0_7, %c0_8] : memref<1x128x128xbf16, #tpu.memory_space<vmem>>, vector<1x128x128xbf16>
    %8 = vector.shape_cast %7 : vector<1x128x128xbf16> to vector<128x128xbf16>
    %c0_9 = arith.constant 0 : index
    %c0_10 = arith.constant 0 : index
    %9 = vector.load %arg6[%c0_9, %c0_10] : memref<128x1xf32, #tpu.memory_space<vmem>>, vector<128x1xf32>
    %10 = arith.truncf %6 : vector<32x128xf32> to vector<32x128xbf16>
    %c0_11 = arith.constant 0 : index
    %c0_12 = arith.constant 0 : index
    %c0_13 = arith.constant 0 : index
    %11 = vector.load %arg5[%c0_11, %c0_12, %c0_13] : memref<3x256x32xbf16, #tpu.memory_space<vmem>>, vector<1x256x32xbf16>
    %12 = vector.shape_cast %11 : vector<1x256x32xbf16> to vector<256x32xbf16>
    %cst_14 = arith.constant dense<0.000000e+00> : vector<256x128xf32>
    %13 = tpu.matmul %12, %10, %cst_14 {dimension_numbers = #tpu.dot_dimension_numbers<[1], [0], [0], [1], [0, 0, 1, 1], [], []>} : vector<256x32xbf16>, vector<32x128xbf16>, vector<256x128xf32> -> vector<256x128xf32>
    %14 = vector.extract_strided_slice %13 {offsets = [0, 0], sizes = [128, 128], strides = [1, 1]} : vector<256x128xf32> to vector<128x128xf32>
    %15 = arith.truncf %14 : vector<128x128xf32> to vector<128x128xbf16>
    %cst_15 = arith.constant dense<0.000000e+00> : vector<128x128xf32>
    %16 = tpu.matmul %15, %8, %cst_15 {dimension_numbers = #tpu.dot_dimension_numbers<[1], [0], [0], [1], [0, 0, 1, 1], [], []>} : vector<128x128xbf16>, vector<128x128xbf16>, vector<128x128xf32> -> vector<128x128xf32>
    %17 = vector.extract_strided_slice %13 {offsets = [128, 0], sizes = [128, 128], strides = [1, 1]} : vector<256x128xf32> to vector<128x128xf32>
    %18 = arith.addf %16, %17 : vector<128x128xf32>
    %19 = vector.broadcast %9 : vector<128x1xf32> to vector<128x128xf32>
    %20 = arith.addf %18, %19 : vector<128x128xf32>
    %21 = vector.extract_strided_slice %20 {offsets = [0, 0], sizes = [64, 128], strides = [1, 1]} : vector<128x128xf32> to vector<64x128xf32>
    %22 = arith.negf %21 : vector<64x128xf32>
    %23 = math.exp %22 : vector<64x128xf32>
    %cst_16 = arith.constant 1.000000e+00 : f32
    %24 = vector.broadcast %cst_16 : f32 to vector<64x128xf32>
    %25 = arith.addf %24, %23 : vector<64x128xf32>
    %26 = arith.divf %24, %25 : vector<64x128xf32>
    %27 = vector.extract_strided_slice %26 {offsets = [0, 0], sizes = [32, 128], strides = [1, 1]} : vector<64x128xf32> to vector<32x128xf32>
    %28 = vector.extract_strided_slice %26 {offsets = [32, 0], sizes = [32, 128], strides = [1, 1]} : vector<64x128xf32> to vector<32x128xf32>
    %29 = vector.extract_strided_slice %20 {offsets = [64, 0], sizes = [32, 128], strides = [1, 1]} : vector<128x128xf32> to vector<32x128xf32>
    %30 = vector.extract_strided_slice %20 {offsets = [96, 0], sizes = [32, 128], strides = [1, 1]} : vector<128x128xf32> to vector<32x128xf32>
    %31 = arith.mulf %27, %30 : vector<32x128xf32>
    %32 = arith.addf %29, %31 : vector<32x128xf32>
    %33 = math.tanh %32 : vector<32x128xf32>
    %cst_17 = arith.constant 1.000000e+00 : f32
    %34 = vector.broadcast %cst_17 : f32 to vector<32x128xf32>
    %35 = arith.subf %34, %28 : vector<32x128xf32>
    %36 = arith.mulf %35, %33 : vector<32x128xf32>
    %37 = arith.mulf %28, %6 : vector<32x128xf32>
    %38 = arith.addf %36, %37 : vector<32x128xf32>
    %39 = arith.truncf %38 : vector<32x128xf32> to vector<32x128xbf16>
    %c1 = arith.constant 1 : index
    %c0_18 = arith.constant 0 : index
    %c0_19 = arith.constant 0 : index
    %40 = vector.load %arg5[%c1, %c0_18, %c0_19] : memref<3x256x32xbf16, #tpu.memory_space<vmem>>, vector<1x256x32xbf16>
    %41 = vector.shape_cast %40 : vector<1x256x32xbf16> to vector<256x32xbf16>
    %cst_20 = arith.constant dense<0.000000e+00> : vector<256x128xf32>
    %42 = tpu.matmul %41, %39, %cst_20 {dimension_numbers = #tpu.dot_dimension_numbers<[1], [0], [0], [1], [0, 0, 1, 1], [], []>} : vector<256x32xbf16>, vector<32x128xbf16>, vector<256x128xf32> -> vector<256x128xf32>
    %43 = vector.extract_strided_slice %42 {offsets = [0, 0], sizes = [128, 128], strides = [1, 1]} : vector<256x128xf32> to vector<128x128xf32>
    %44 = arith.truncf %43 : vector<128x128xf32> to vector<128x128xbf16>
    %cst_21 = arith.constant dense<0.000000e+00> : vector<128x128xf32>
    %45 = tpu.matmul %44, %8, %cst_21 {dimension_numbers = #tpu.dot_dimension_numbers<[1], [0], [0], [1], [0, 0, 1, 1], [], []>} : vector<128x128xbf16>, vector<128x128xbf16>, vector<128x128xf32> -> vector<128x128xf32>
    %46 = vector.extract_strided_slice %42 {offsets = [128, 0], sizes = [128, 128], strides = [1, 1]} : vector<256x128xf32> to vector<128x128xf32>
    %47 = arith.addf %45, %46 : vector<128x128xf32>
    %48 = vector.broadcast %9 : vector<128x1xf32> to vector<128x128xf32>
    %49 = arith.addf %47, %48 : vector<128x128xf32>
    %50 = vector.extract_strided_slice %49 {offsets = [0, 0], sizes = [64, 128], strides = [1, 1]} : vector<128x128xf32> to vector<64x128xf32>
    %51 = arith.negf %50 : vector<64x128xf32>
    %52 = math.exp %51 : vector<64x128xf32>
    %cst_22 = arith.constant 1.000000e+00 : f32
    %53 = vector.broadcast %cst_22 : f32 to vector<64x128xf32>
    %54 = arith.addf %53, %52 : vector<64x128xf32>
    %55 = arith.divf %53, %54 : vector<64x128xf32>
    %56 = vector.extract_strided_slice %55 {offsets = [0, 0], sizes = [32, 128], strides = [1, 1]} : vector<64x128xf32> to vector<32x128xf32>
    %57 = vector.extract_strided_slice %55 {offsets = [32, 0], sizes = [32, 128], strides = [1, 1]} : vector<64x128xf32> to vector<32x128xf32>
    %58 = vector.extract_strided_slice %49 {offsets = [64, 0], sizes = [32, 128], strides = [1, 1]} : vector<128x128xf32> to vector<32x128xf32>
    %59 = vector.extract_strided_slice %49 {offsets = [96, 0], sizes = [32, 128], strides = [1, 1]} : vector<128x128xf32> to vector<32x128xf32>
    %60 = arith.mulf %56, %59 : vector<32x128xf32>
    %61 = arith.addf %58, %60 : vector<32x128xf32>
    %62 = math.tanh %61 : vector<32x128xf32>
    %cst_23 = arith.constant 1.000000e+00 : f32
    %63 = vector.broadcast %cst_23 : f32 to vector<32x128xf32>
    %64 = arith.subf %63, %57 : vector<32x128xf32>
    %65 = arith.mulf %64, %62 : vector<32x128xf32>
    %66 = arith.mulf %57, %38 : vector<32x128xf32>
    %67 = arith.addf %65, %66 : vector<32x128xf32>
    %68 = arith.truncf %67 : vector<32x128xf32> to vector<32x128xbf16>
    %c2 = arith.constant 2 : index
    %c0_24 = arith.constant 0 : index
    %c0_25 = arith.constant 0 : index
    %69 = vector.load %arg5[%c2, %c0_24, %c0_25] : memref<3x256x32xbf16, #tpu.memory_space<vmem>>, vector<1x256x32xbf16>
    %70 = vector.shape_cast %69 : vector<1x256x32xbf16> to vector<256x32xbf16>
    %cst_26 = arith.constant dense<0.000000e+00> : vector<256x128xf32>
    %71 = tpu.matmul %70, %68, %cst_26 {dimension_numbers = #tpu.dot_dimension_numbers<[1], [0], [0], [1], [0, 0, 1, 1], [], []>} : vector<256x32xbf16>, vector<32x128xbf16>, vector<256x128xf32> -> vector<256x128xf32>
    %72 = vector.extract_strided_slice %71 {offsets = [0, 0], sizes = [128, 128], strides = [1, 1]} : vector<256x128xf32> to vector<128x128xf32>
    %73 = arith.truncf %72 : vector<128x128xf32> to vector<128x128xbf16>
    %cst_27 = arith.constant dense<0.000000e+00> : vector<128x128xf32>
    %74 = tpu.matmul %73, %8, %cst_27 {dimension_numbers = #tpu.dot_dimension_numbers<[1], [0], [0], [1], [0, 0, 1, 1], [], []>} : vector<128x128xbf16>, vector<128x128xbf16>, vector<128x128xf32> -> vector<128x128xf32>
    %75 = vector.extract_strided_slice %71 {offsets = [128, 0], sizes = [128, 128], strides = [1, 1]} : vector<256x128xf32> to vector<128x128xf32>
    %76 = arith.addf %74, %75 : vector<128x128xf32>
    %77 = vector.broadcast %9 : vector<128x1xf32> to vector<128x128xf32>
    %78 = arith.addf %76, %77 : vector<128x128xf32>
    %79 = vector.extract_strided_slice %78 {offsets = [0, 0], sizes = [64, 128], strides = [1, 1]} : vector<128x128xf32> to vector<64x128xf32>
    %80 = arith.negf %79 : vector<64x128xf32>
    %81 = math.exp %80 : vector<64x128xf32>
    %cst_28 = arith.constant 1.000000e+00 : f32
    %82 = vector.broadcast %cst_28 : f32 to vector<64x128xf32>
    %83 = arith.addf %82, %81 : vector<64x128xf32>
    %84 = arith.divf %82, %83 : vector<64x128xf32>
    %85 = vector.extract_strided_slice %84 {offsets = [0, 0], sizes = [32, 128], strides = [1, 1]} : vector<64x128xf32> to vector<32x128xf32>
    %86 = vector.extract_strided_slice %84 {offsets = [32, 0], sizes = [32, 128], strides = [1, 1]} : vector<64x128xf32> to vector<32x128xf32>
    %87 = vector.extract_strided_slice %78 {offsets = [64, 0], sizes = [32, 128], strides = [1, 1]} : vector<128x128xf32> to vector<32x128xf32>
    %88 = vector.extract_strided_slice %78 {offsets = [96, 0], sizes = [32, 128], strides = [1, 1]} : vector<128x128xf32> to vector<32x128xf32>
    %89 = arith.mulf %85, %88 : vector<32x128xf32>
    %90 = arith.addf %87, %89 : vector<32x128xf32>
    %91 = math.tanh %90 : vector<32x128xf32>
    %cst_29 = arith.constant 1.000000e+00 : f32
    %92 = vector.broadcast %cst_29 : f32 to vector<32x128xf32>
    %93 = arith.subf %92, %86 : vector<32x128xf32>
    %94 = arith.mulf %93, %91 : vector<32x128xf32>
    %95 = arith.mulf %86, %67 : vector<32x128xf32>
    %96 = arith.addf %94, %95 : vector<32x128xf32>
    %c0_30 = arith.constant 0 : index
    %c0_31 = arith.constant 0 : index
    %c0_32 = arith.constant 0 : index
    %97 = vector.load %arg7[%c0_30, %c0_31, %c0_32] : memref<1x32x128xf32, #tpu.memory_space<vmem>>, vector<1x32x128xf32>
    %98 = vector.shape_cast %97 : vector<1x32x128xf32> to vector<32x128xf32>
    %99 = vector.shape_cast %96 : vector<32x128xf32> to vector<1x32x128xf32>
    tpu.vector_store %arg7[%c0_30, %c0_31, %c0_32], %99 {strides = array<i32>} : memref<1x32x128xf32, #tpu.memory_space<vmem>>, vector<1x32x128xf32>,
    return
  }
  func.func @transform_0(%arg0: i32) -> (i32, i32, i32) {
    %c0_i32 = arith.constant 0 : i32
    %c0_i32_0 = arith.constant 0 : i32
    %c0_i32_1 = arith.constant 0 : i32
    return %arg0, %c0_i32, %c0_i32_0 : i32, i32, i32
  }
  func.func @transform_1(%arg0: i32) -> (i32, i32, i32) {
    %c0_i32 = arith.constant 0 : i32
    %c0_i32_0 = arith.constant 0 : i32
    %c0_i32_1 = arith.constant 0 : i32
    return %arg0, %c0_i32, %c0_i32_0 : i32, i32, i32
  }
  func.func @transform_2(%arg0: i32) -> (i32, i32) {
    %c0_i32 = arith.constant 0 : i32
    %c0_i32_0 = arith.constant 0 : i32
    %c0_i32_1 = arith.constant 0 : i32
    return %c0_i32, %c0_i32_0 : i32, i32
  }
  func.func @transform_3(%arg0: i32) -> (i32, i32) {
    %c0_i32 = arith.constant 0 : i32
    %c0_i32_0 = arith.constant 0 : i32
    %c0_i32_1 = arith.constant 0 : i32
    return %c0_i32, %c0_i32_0 : i32, i32
  }
  func.func @transform_4(%arg0: i32) -> (i32, i32, i32) {
    %c0_i32 = arith.constant 0 : i32
    %c0_i32_0 = arith.constant 0 : i32
    %c0_i32_1 = arith.constant 0 : i32
    %c0_i32_2 = arith.constant 0 : i32
    return %c0_i32, %c0_i32_0, %c0_i32_1 : i32, i32, i32
  }
  func.func @transform_5(%arg0: i32) -> (i32, i32) {
    %c0_i32 = arith.constant 0 : i32
    %c0_i32_0 = arith.constant 0 : i32
    %c0_i32_1 = arith.constant 0 : i32
    return %c0_i32, %c0_i32_0 : i32, i32
  }
  func.func @transform_6(%arg0: i32) -> (i32, i32, i32) {
    %c0_i32 = arith.constant 0 : i32
    %c0_i32_0 = arith.constant 0 : i32
    %c0_i32_1 = arith.constant 0 : i32
    return %arg0, %c0_i32, %c0_i32_0 : i32, i32, i32
  }
}

</mosaic_0001>

<llo_original>
// kernel: tpu_custom_call.1
$region0: #{tpu_custom_call.1}
  #allocation0 [shape = 'u32[]', space=smem, size = 0x4, offset = 0x4, fixed_abs, tag = 'smem constant byte address 0x4 - core index']
  #allocation1 [shape = 'u32[144,128]{1,0:T(1,128)}', space=vmem, size = 0x12000, scoped, tag = 'internal scratch']
  %s0 = inlined_call_operand.vmem [shape: bf16[2,48,128], index: 0, kind: input, shape index: {}]
  %s1 = inlined_call_operand.vmem [shape: bf16[2,128,128], index: 1, kind: input, shape index: {}]
  %s2 = inlined_call_operand.vmem [shape: bf16[32,48], index: 2, kind: input, shape index: {}]
  %s3 = inlined_call_operand.vmem [shape: f32[32,1], index: 3, kind: input, shape index: {}]
  %s4 = inlined_call_operand.vmem [shape: bf16[3,256,32], index: 4, kind: input, shape index: {}]
  %s5 = inlined_call_operand.vmem [shape: f32[128,1], index: 5, kind: input, shape index: {}]
  %s6 = inlined_call_operand.hbm [shape: f32[2,32,128], index: 6, kind: output, shape index: {}]
  %s7 = sld [smem:[#allocation0]]
  $region57: #{tpu_custom_call.1} parent=0
    _
  %s9 = ssub.s32 1, %s7
  %s10 = scalar_select 0, %s9, %s7
  $region1: #{tpu_custom_call.1} parent=0
    #allocation2 [shape = 'u8[32768]{0}', space=vmem, size = 0x8000, scoped, tag = 'output window, operand 0']
    #allocation3 [shape = 's32[2]{0}', space=sflag, size = 0x8, scoped, tag = 'scoped memory for tpu_custom_call.1']
    %11 = vsyncpa [#allocation3], 0
    %s12 = scalar_lea.sflag [#allocation3], 1
    %13 = vsyncpa %s12, 0
    loop: start=0, step=1, limit=4
    $region2: #{tpu_custom_call.1} parent=1 // loop_pre_header
      _
    $region3: #{tpu_custom_call.1} parent=1 // loop_header
      %s15 = sphi 0, %s19
      %p16 = scmp.ge.s32.totalorder %s15, 4
      %s25 = sphi 0, %s27
      %s28 = sphi 0, %s25
      %s29 = sphi 0, %s28
      %s45 = sphi 0, %s29
      %s51 = sphi 0, %s53
      %s54 = sphi 0, %s51
      %s55 = sphi 0, %s54
      %s71 = sphi 0, %s55
      %s75 = sphi 0, %s75
      %s77 = sphi 0, %s75
      %s78 = sphi 0, %s77
      %s92 = sphi 0, %s78
      %s96 = sphi 0, %s96
      %s98 = sphi 0, %s96
      %s99 = sphi 0, %s98
      %s113 = sphi 0, %s99
      %s117 = sphi 0, %s117
      %s119 = sphi 0, %s117
      %s120 = sphi 0, %s119
      %s134 = sphi 0, %s120
      %s138 = sphi 0, %s138
      %s140 = sphi 0, %s138
      %s141 = sphi 0, %s140
      %s155 = sphi 0, %s141
      %s161 = sphi 0, %s163
      %s164 = sphi 0, %s161
      %s165 = sphi 0, %s164
      %s181 = sphi 0, %s165
    $region4: #{tpu_custom_call.1} parent=1 // loop_header_branch
      %18 = sbr.rel (%p16) target = $region8
    $region5: #{tpu_custom_call.1} parent=1 // loop_body
      %s20 = ssub.s32 %s15, 1
      %s21 = ssub.s32 %s15, 2
      %s22 = sadd.s32 %s15, 1
      %s23 = ssub.s32 %s15, %s22
      %p24 = scmp.eq.s32.totalorder %s23, 0
      %s26 = sadd.s32 %s25, 1
      %s27 = scalar_select %p24, %s25, %s26
      %p30 = pneg %p24
      %p31 = scmp.eq.s32.totalorder %s15, 1
      %p32 = por %p30, %p31
      %p33 = scmp.ne.s32.totalorder %s25, %s28
      %p34 = scmp.eq.s32.totalorder %s15, 0
      %p35 = por %p33, %p34
      %p36 = scmp.ne.s32.totalorder %s25, %s28
      %p37 = scmp.eq.s32.totalorder %s20, 1
      %p38 = por %p36, %p37
      %p39 = scmp.ne.s32.totalorder %s28, %s29
      %p40 = scmp.eq.s32.totalorder %s20, 0
      %p41 = por %p39, %p40
      %p42 = scmp.ne.s32.totalorder %s28, %s29
      %p43 = scmp.eq.s32.totalorder %s21, 1
      %p44 = por %p42, %p43
      %p46 = scmp.ne.s32.totalorder %s29, %s45
      %p47 = scmp.eq.s32.totalorder %s21, 0
      %p48 = por %p46, %p47
      %s49 = ssub.s32 %s15, %s22
      %p50 = scmp.eq.s32.totalorder %s49, 0
      %s52 = sadd.s32 %s51, 1
      %s53 = scalar_select %p50, %s51, %s52
      %p56 = pneg %p50
      %p57 = scmp.eq.s32.totalorder %s15, 1
      %p58 = por %p56, %p57
      %p59 = scmp.ne.s32.totalorder %s51, %s54
      %p60 = scmp.eq.s32.totalorder %s15, 0
      %p61 = por %p59, %p60
      %p62 = scmp.ne.s32.totalorder %s51, %s54
      %p63 = scmp.eq.s32.totalorder %s20, 1
      %p64 = por %p62, %p63
      %p65 = scmp.ne.s32.totalorder %s54, %s55
      %p66 = scmp.eq.s32.totalorder %s20, 0
      %p67 = por %p65, %p66
      %p68 = scmp.ne.s32.totalorder %s54, %s55
      %p69 = scmp.eq.s32.totalorder %s21, 1
      %p70 = por %p68, %p69
      %p72 = scmp.ne.s32.totalorder %s55, %s71
      %p73 = scmp.eq.s32.totalorder %s21, 0
      %p74 = por %p72, %p73
      %s76 = sadd.s32 %s75, 1
      %p79 = scmp.eq.s32.totalorder %s15, 1
      %p80 = scmp.ne.s32.totalorder %s75, %s77
      %p81 = scmp.eq.s32.totalorder %s15, 0
      %p82 = por %p80, %p81
      %p83 = scmp.ne.s32.totalorder %s75, %s77
      %p84 = scmp.eq.s32.totalorder %s20, 1
      %p85 = por %p83, %p84
      %p86 = scmp.ne.s32.totalorder %s77, %s78
      %p87 = scmp.eq.s32.totalorder %s20, 0
      %p88 = por %p86, %p87
      %p89 = scmp.ne.s32.totalorder %s77, %s78
      %p90 = scmp.eq.s32.totalorder %s21, 1
      %p91 = por %p89, %p90
      %p93 = scmp.ne.s32.totalorder %s78, %s92
      %p94 = scmp.eq.s32.totalorder %s21, 0
      %p95 = por %p93, %p94
      %s97 = sadd.s32 %s96, 1
      %p100 = scmp.eq.s32.totalorder %s15, 1
      %p101 = scmp.ne.s32.totalorder %s96, %s98
      %p102 = scmp.eq.s32.totalorder %s15, 0
      %p103 = por %p101, %p102
      %p104 = scmp.ne.s32.totalorder %s96, %s98
      %p105 = scmp.eq.s32.totalorder %s20, 1
      %p106 = por %p104, %p105
      %p107 = scmp.ne.s32.totalorder %s98, %s99
      %p108 = scmp.eq.s32.totalorder %s20, 0
      %p109 = por %p107, %p108
      %p110 = scmp.ne.s32.totalorder %s98, %s99
      %p111 = scmp.eq.s32.totalorder %s21, 1
      %p112 = por %p110, %p111
      %p114 = scmp.ne.s32.totalorder %s99, %s113
      %p115 = scmp.eq.s32.totalorder %s21, 0
      %p116 = por %p114, %p115
      %s118 = sadd.s32 %s117, 1
      %p121 = scmp.eq.s32.totalorder %s15, 1
      %p122 = scmp.ne.s32.totalorder %s117, %s119
      %p123 = scmp.eq.s32.totalorder %s15, 0
      %p124 = por %p122, %p123
      %p125 = scmp.ne.s32.totalorder %s117, %s119
      %p126 = scmp.eq.s32.totalorder %s20, 1
      %p127 = por %p125, %p126
      %p128 = scmp.ne.s32.totalorder %s119, %s120
      %p129 = scmp.eq.s32.totalorder %s20, 0
      %p130 = por %p128, %p129
      %p131 = scmp.ne.s32.totalorder %s119, %s120
      %p132 = scmp.eq.s32.totalorder %s21, 1
      %p133 = por %p131, %p132
      %p135 = scmp.ne.s32.totalorder %s120, %s134
      %p136 = scmp.eq.s32.totalorder %s21, 0
      %p137 = por %p135, %p136
      %s139 = sadd.s32 %s138, 1
      %p142 = scmp.eq.s32.totalorder %s15, 1
      %p143 = scmp.ne.s32.totalorder %s138, %s140
      %p144 = scmp.eq.s32.totalorder %s15, 0
      %p145 = por %p143, %p144
      %p146 = scmp.ne.s32.totalorder %s138, %s140
      %p147 = scmp.eq.s32.totalorder %s20, 1
      %p148 = por %p146, %p147
      %p149 = scmp.ne.s32.totalorder %s140, %s141
      %p150 = scmp.eq.s32.totalorder %s20, 0
      %p151 = por %p149, %p150
      %p152 = scmp.ne.s32.totalorder %s140, %s141
      %p153 = scmp.eq.s32.totalorder %s21, 1
      %p154 = por %p152, %p153
      %p156 = scmp.ne.s32.totalorder %s141, %s155
      %p157 = scmp.eq.s32.totalorder %s21, 0
      %p158 = por %p156, %p157
      %s159 = ssub.s32 %s15, %s22
      %p160 = scmp.eq.s32.totalorder %s159, 0
      %s162 = sadd.s32 %s161, 1
      %s163 = scalar_select %p160, %s161, %s162
      %p166 = pneg %p160
      %p167 = scmp.eq.s32.totalorder %s15, 1
      %p168 = por %p166, %p167
      %p169 = scmp.ne.s32.totalorder %s161, %s164
      %p170 = scmp.eq.s32.totalorder %s15, 0
      %p171 = por %p169, %p170
      %p172 = scmp.ne.s32.totalorder %s161, %s164
      %p173 = scmp.eq.s32.totalorder %s20, 1
      %p174 = por %p172, %p173
      %p175 = scmp.ne.s32.totalorder %s164, %s165
      %p176 = scmp.eq.s32.totalorder %s20, 0
      %p177 = por %p175, %p176
      %p178 = scmp.ne.s32.totalorder %s164, %s165
      %p179 = scmp.eq.s32.totalorder %s21, 1
      %p180 = por %p178, %p179
      %p182 = scmp.ne.s32.totalorder %s165, %s181
      %p183 = scmp.eq.s32.totalorder %s21, 0
      %p184 = por %p182, %p183
      %p185 = scmp.le.s32.totalorder 1, %s15
      %p186 = scmp.lt.s32.totalorder %s15, 3
      %p187 = pnand %p185, %p186
      %p188 = pneg %p187
      // Predicated region
      $region9: #{tpu_custom_call.1} parent=5 // pred_check
        _
      $region10: #{tpu_custom_call.1} parent=5 // pred_check_branch
        %190 = sbr.rel (%p187) target = $region12
      $region11: #{tpu_custom_call.1} parent=5 // pred_region
        %s191 = ssub.s32 %s15, 1
        // Predicated region
        $region13: #{tpu_custom_call.1} parent=11 // pred_check
          %p192 = pneg %p88
        $region14: #{tpu_custom_call.1} parent=11 // pred_check_branch
          %194 = sbr.rel (%p192) target = $region16
        $region15: #{tpu_custom_call.1} parent=11 // pred_region
          _
        $region16: #{tpu_custom_call.1} parent=11 // pred_fallthru
          _
        // Predicated region
        $region17: #{tpu_custom_call.1} parent=11 // pred_check
          %p195 = pneg %p109
        $region18: #{tpu_custom_call.1} parent=11 // pred_check_branch
          %197 = sbr.rel (%p195) target = $region20
        $region19: #{tpu_custom_call.1} parent=11 // pred_region
          _
        $region20: #{tpu_custom_call.1} parent=11 // pred_fallthru
          _
        // Predicated region
        $region21: #{tpu_custom_call.1} parent=11 // pred_check
          %p198 = pneg %p130
        $region22: #{tpu_custom_call.1} parent=11 // pred_check_branch
          %200 = sbr.rel (%p198) target = $region24
        $region23: #{tpu_custom_call.1} parent=11 // pred_region
          _
        $region24: #{tpu_custom_call.1} parent=11 // pred_fallthru
          _
        // Predicated region
        $region25: #{tpu_custom_call.1} parent=11 // pred_check
          %p201 = pneg %p151
        $region26: #{tpu_custom_call.1} parent=11 // pred_check_branch
          %203 = sbr.rel (%p201) target = $region28
        $region27: #{tpu_custom_call.1} parent=11 // pred_region
          _
        $region28: #{tpu_custom_call.1} parent=11 // pred_fallthru
          _
      $region12: #{tpu_custom_call.1} parent=5 // pred_fallthru
        _
      %p204 = scmp.lt.s32.totalorder %s15, 2
      // Predicated region
      $region29: #{tpu_custom_call.1} parent=5 // pred_check
        %p205 = pneg %p204
      $region30: #{tpu_custom_call.1} parent=5 // pred_check_branch
        %207 = sbr.rel (%p205) target = $region32
      $region31: #{tpu_custom_call.1} parent=5 // pred_region
        // Predicated region
        $region33: #{tpu_custom_call.1} parent=31 // pred_check
          %p208 = pneg %p35
        $region34: #{tpu_custom_call.1} parent=31 // pred_check_branch
          %210 = sbr.rel (%p208) target = $region36
        $region35: #{tpu_custom_call.1} parent=31 // pred_region
          %p211 = scmp.lt.s32.totalorder %s15, 1
          %s212 = scalar_select %p211, %s15, 1
          %s213 = smul.addr %s212, 6
          %s214 = smul.addr %s213, 4
          %s215 = scalar_lea.vmem %s0, %s214
        $region36: #{tpu_custom_call.1} parent=31 // pred_fallthru
          _
        // Predicated region
        $region37: #{tpu_custom_call.1} parent=31 // pred_check
          %p216 = pneg %p61
        $region38: #{tpu_custom_call.1} parent=31 // pred_check_branch
          %218 = sbr.rel (%p216) target = $region40
        $region39: #{tpu_custom_call.1} parent=31 // pred_region
          %p219 = scmp.lt.s32.totalorder %s15, 1
          %s220 = scalar_select %p219, %s15, 1
          %s221 = smul.addr %s220, 16
          %s222 = smul.addr %s221, 4
          %s223 = scalar_lea.vmem %s1, %s222
        $region40: #{tpu_custom_call.1} parent=31 // pred_fallthru
          _
      $region32: #{tpu_custom_call.1} parent=5 // pred_fallthru
        _
      %p224 = scmp.le.s32.totalorder 1, %s15
      %p225 = scmp.lt.s32.totalorder %s15, 3
      %p226 = pnand %p224, %p225
      %p227 = pneg %p226
      // Predicated region
      $region41: #{tpu_custom_call.1} parent=5 // pred_check
        _
      $region42: #{tpu_custom_call.1} parent=5 // pred_check_branch
        %229 = sbr.rel (%p226) target = $region44
      $region43: #{tpu_custom_call.1} parent=5 // pred_region
        %s230 = ssub.s32 %s15, 1
        %p231 = scmp.lt.s32.totalorder %s20, 1
        %s232 = scalar_select %p231, %s20, 1
        %s233 = smul.addr %s232, 6
        %s234 = smul.addr %s233, 4
        %s235 = scalar_lea.vmem %s0, %s234
        %p236 = pneg %p41
        %p237 = pneg %p38
        %p238 = scmp.lt.s32.totalorder %s20, 1
        %s239 = scalar_select %p238, %s20, 1
        %s240 = smul.addr %s239, 16
        %s241 = smul.addr %s240, 4
        %s242 = scalar_lea.vmem %s1, %s241
        %p243 = pneg %p67
        %p244 = pneg %p64
        %p245 = pneg %p88
        %p246 = pneg %p85
        %p247 = pneg %p109
        %p248 = pneg %p106
        %p249 = pneg %p130
        %p250 = pneg %p127
        %p251 = pneg %p151
        %p252 = pneg %p148
        %p253 = pneg %p177
        %p254 = pneg %p174
        %s255 = sand.u32 %s164, 1
        %s256 = scalar_lea.sflag [#allocation3], %s255
        %s257 = sand.u32 %s164, 1
        %s258 = smul.addr %s257, 32
        %s259 = scalar_lea.vmem [#allocation2], %s258
        %p260 = scmp.lt.s32.totalorder %s20, 1
        %s261 = scalar_select %p260, %s20, 1
        %s262 = smul.addr %s261, 6
        %s263 = smul.addr %s262, 4
        %s264 = scalar_lea.vmem %s0, %s263
        %p265 = scmp.lt.s32.totalorder %s20, 1
        %s266 = scalar_select %p265, %s20, 1
        %s267 = smul.addr %s266, 16
        %s268 = smul.addr %s267, 4
        %s269 = scalar_lea.vmem %s1, %s268
        %v271 = vld [vmem:[%s2] sm:$0xf]
        %v272 = vld [vmem:[%s2 + $0x4] sm:$0xf]
        %v273 = vld [vmem:[%s2 + $0x8] sm:$0xf]
        %v274 = vld [vmem:[%s2 + $0xc] sm:$0xf]
        %v275 = vld [vmem:[%s264] sm:$0xf]
        %v276 = vld [vmem:[%s264 + $0x4] sm:$0xf]
        %v277 = vld [vmem:[%s264 + $0x8] sm:$0xf]
        %v278 = vld [vmem:[%s264 + $0xc] sm:$0xf]
        %v279 = vld [vmem:[%s264 + $0x10] sm:$0xf]
        %v280 = vld [vmem:[%s264 + $0x14] sm:$0xf]
        %v281 = vld [vmem:[%s3] sm:$0xff]
        %v282 = vld [vmem:[%s3 + $0x8] sm:$0xff]
        %v283 = vld [vmem:[%s3 + $0x10] sm:$0xff]
        %v284 = vld [vmem:[%s3 + $0x18] sm:$0xff]
        %286 = vset.pattern.permute.xlu0 0
        %287 = vperm.xlu0 %286, %v281
        %v288 = vpop.permute.xlu0 %287
        %291 = vset.pattern.permute.xlu0 0
        %292 = vperm.xlu0 %291, %v282
        %v293 = vpop.permute.xlu0 %292
        %296 = vset.pattern.permute.xlu0 0
        %297 = vperm.xlu0 %296, %v283
        %v298 = vpop.permute.xlu0 %297
        %301 = vset.pattern.permute.xlu0 0
        %302 = vperm.xlu0 %301, %v284
        %v303 = vpop.permute.xlu0 %302
        %v309 = vunpack.c.l.b16 %v271
        %v310 = vunpack.c.l.b16 %v272
        %v311 = vunpack.c.l.b16 %v273
        %v312 = vunpack.c.l.b16 %v274
        %v313 = vpack.c.b16 %v310, %v309
        %v314 = vpack.c.b16 %v312, %v311
        %v321 = vunpack.c.l.b16 %v275
        %v322 = vunpack.c.l.b16 %v276
        %v323 = vunpack.c.l.b16 %v277
        %v324 = vunpack.c.l.b16 %v278
        %v325 = vunpack.c.l.b16 %v279
        %v326 = vunpack.c.l.b16 %v280
        %v327 = vpack.c.b16 %v322, %v321
        %v328 = vpack.c.b16 %v324, %v323
        %v329 = vpack.c.b16 %v326, %v325
        %vm333 = vcmask 392192
        %v335 = vsel %vm333, %v313, 0
        %v338 = vsel %vm333, %v314, 0
        %340 = vmatprep.subr.bf16.mxu0 0
        %341 = vmatpush1.bf16.msra.mxu0 %v327
        %342 = vmatprep.subr.bf16.mxu0 0
        %343 = vmatpush1.bf16.msra.mxu0 %v328
        %344 = vmatprep.subr.bf16.mxu0 0
        %345 = vmatpush1.bf16.msra.mxu0 %v329
        %346 = vmatprep.subr.bf16.mxu0 0
        %347 = vmatpush1.bf16.msra.mxu0 0
        %348 = vmatprep.subr.bf16.mxu0 0
        %349 = vmatpush1.bf16.msra.mxu0 0
        %350 = vmatprep.subr.bf16.mxu0 0
        %351 = vmatpush1.bf16.msra.mxu0 0
        %352 = vmatprep.subr.bf16.mxu0 0
        %353 = vmatpush1.bf16.msra.mxu0 0
        %354 = vmatprep.subr.bf16.mxu0 0
        %355 = vmatpush1.bf16.msra.mxu0 0
        %356 = vmatprep.subr.bf16.mxu0 0
        %357 = vmatpush1.bf16.msra.mxu0 0
        %358 = vmatprep.subr.bf16.mxu0 0
        %359 = vmatpush1.bf16.msra.mxu0 0
        %360 = vmatprep.subr.bf16.mxu0 0
        %361 = vmatpush1.bf16.msra.mxu0 0
        %362 = vmatprep.subr.bf16.mxu0 0
        %363 = vmatpush1.bf16.msra.mxu0 0
        %364 = vmatprep.subr.bf16.mxu0 0
        %365 = vmatpush1.bf16.msra.mxu0 0
        %366 = vmatprep.subr.bf16.mxu0 0
        %367 = vmatpush1.bf16.msra.mxu0 0
        %368 = vmatprep.subr.bf16.mxu0 0
        %369 = vmatpush1.bf16.msra.mxu0 0
        %370 = vmatprep.subr.bf16.mxu0 0
        %371 = vmatpush1.bf16.msra.mxu0 0
        %372 = vmatprep.mubr.bf16.mxu0 0
        %373 = vmatmul.mubr.bf16.gmra.mrb[0].mxu0 %v335
        %v374 = vpop.f32.mrb[0].mxu0
        %v375 = vadd.f32 %v288, %v374
        %v376 = vpop.f32.mrb[0].mxu0
        %v377 = vpop.f32.mrb[0].mxu0
        %v378 = vadd.f32 %v293, %v377
        %v379 = vpop.f32.mrb[0].mxu0
        %380 = vmatprep.mubr.bf16.mxu0 0
        %381 = vmatmul.mubr.bf16.gmra.mrb[0].mxu0 %v338
        %v382 = vpop.f32.mrb[0].mxu0
        %v383 = vadd.f32 %v298, %v382
        %v384 = vpop.f32.mrb[0].mxu0
        %v385 = vpop.f32.mrb[0].mxu0
        %v386 = vadd.f32 %v303, %v385
        %v387 = vpop.f32.mrb[0].mxu0
        %388 = vdwg.mxu0
        %v389 = vld [vmem:[%s269] sm:$0xf]
        %v390 = vld [vmem:[%s269 + $0x4] sm:$0xf]
        %v391 = vld [vmem:[%s269 + $0x8] sm:$0xf]
        %v392 = vld [vmem:[%s269 + $0xc] sm:$0xf]
        %v393 = vld [vmem:[%s269 + $0x10] sm:$0xf]
        %v394 = vld [vmem:[%s269 + $0x14] sm:$0xf]
        %v395 = vld [vmem:[%s269 + $0x18] sm:$0xf]
        %v396 = vld [vmem:[%s269 + $0x1c] sm:$0xf]
        %v397 = vld [vmem:[%s269 + $0x20] sm:$0xf]
        %v398 = vld [vmem:[%s269 + $0x24] sm:$0xf]
        %v399 = vld [vmem:[%s269 + $0x28] sm:$0xf]
        %v400 = vld [vmem:[%s269 + $0x2c] sm:$0xf]
        %v401 = vld [vmem:[%s269 + $0x30] sm:$0xf]
        %v402 = vld [vmem:[%s269 + $0x34] sm:$0xf]
        %v403 = vld [vmem:[%s269 + $0x38] sm:$0xf]
        %v404 = vld [vmem:[%s269 + $0x3c] sm:$0xf]
        %v405 = vld [vmem:[%s5] sm:$0xff]
        %v406 = vld [vmem:[%s5 + $0x8] sm:$0xff]
        %v407 = vld [vmem:[%s5 + $0x10] sm:$0xff]
        %v408 = vld [vmem:[%s5 + $0x18] sm:$0xff]
        %v409 = vld [vmem:[%s5 + $0x20] sm:$0xff]
        %v410 = vld [vmem:[%s5 + $0x28] sm:$0xff]
        %v411 = vld [vmem:[%s5 + $0x30] sm:$0xff]
        %v412 = vld [vmem:[%s5 + $0x38] sm:$0xff]
        %v413 = vld [vmem:[%s5 + $0x40] sm:$0xff]
        %v414 = vld [vmem:[%s5 + $0x48] sm:$0xff]
        %v415 = vld [vmem:[%s5 + $0x50] sm:$0xff]
        %v416 = vld [vmem:[%s5 + $0x58] sm:$0xff]
        %v417 = vld [vmem:[%s5 + $0x60] sm:$0xff]
        %v418 = vld [vmem:[%s5 + $0x68] sm:$0xff]
        %v419 = vld [vmem:[%s5 + $0x70] sm:$0xff]
        %v420 = vld [vmem:[%s5 + $0x78] sm:$0xff]
        %v421 = vpack.c.bf16 %v378, %v375
        %v422 = vpack.c.bf16 %v386, %v383
        %v423 = vld [vmem:[%s4] sm:$0xf]
        %v424 = vld [vmem:[%s4 + $0x4] sm:$0xf]
        %v425 = vld [vmem:[%s4 + $0x8] sm:$0xf]
        %v426 = vld [vmem:[%s4 + $0xc] sm:$0xf]
        %v427 = vld [vmem:[%s4 + $0x10] sm:$0xf]
        %v428 = vld [vmem:[%s4 + $0x14] sm:$0xf]
        %v429 = vld [vmem:[%s4 + $0x18] sm:$0xf]
        %v430 = vld [vmem:[%s4 + $0x1c] sm:$0xf]
        %v431 = vld [vmem:[%s4 + $0x20] sm:$0xf]
        %v432 = vld [vmem:[%s4 + $0x24] sm:$0xf]
        %v433 = vld [vmem:[%s4 + $0x28] sm:$0xf]
        %v434 = vld [vmem:[%s4 + $0x2c] sm:$0xf]
        %v435 = vld [vmem:[%s4 + $0x30] sm:$0xf]
        %v436 = vld [vmem:[%s4 + $0x34] sm:$0xf]
        %v437 = vld [vmem:[%s4 + $0x38] sm:$0xf]
        %v438 = vld [vmem:[%s4 + $0x3c] sm:$0xf]
        %v439 = vld [vmem:[%s4 + $0x40] sm:$0xf]
        %v440 = vld [vmem:[%s4 + $0x44] sm:$0xf]
        %v441 = vld [vmem:[%s4 + $0x48] sm:$0xf]
        %v442 = vld [vmem:[%s4 + $0x4c] sm:$0xf]
        %v443 = vld [vmem:[%s4 + $0x50] sm:$0xf]
        %v444 = vld [vmem:[%s4 + $0x54] sm:$0xf]
        %v445 = vld [vmem:[%s4 + $0x58] sm:$0xf]
        %v446 = vld [vmem:[%s4 + $0x5c] sm:$0xf]
        %v447 = vld [vmem:[%s4 + $0x60] sm:$0xf]
        %v448 = vld [vmem:[%s4 + $0x64] sm:$0xf]
        %v449 = vld [vmem:[%s4 + $0x68] sm:$0xf]
        %v450 = vld [vmem:[%s4 + $0x6c] sm:$0xf]
        %v451 = vld [vmem:[%s4 + $0x70] sm:$0xf]
        %v452 = vld [vmem:[%s4 + $0x74] sm:$0xf]
        %v453 = vld [vmem:[%s4 + $0x78] sm:$0xf]
        %v454 = vld [vmem:[%s4 + $0x7c] sm:$0xf]
        %v487 = vunpack.c.l.b16 %v423
        %v488 = vunpack.c.l.b16 %v424
        %v489 = vunpack.c.l.b16 %v425
        %v490 = vunpack.c.l.b16 %v426
        %v491 = vunpack.c.l.b16 %v427
        %v492 = vunpack.c.l.b16 %v428
        %v493 = vunpack.c.l.b16 %v429
        %v494 = vunpack.c.l.b16 %v430
        %v495 = vunpack.c.l.b16 %v431
        %v496 = vunpack.c.l.b16 %v432
        %v497 = vunpack.c.l.b16 %v433
        %v498 = vunpack.c.l.b16 %v434
        %v499 = vunpack.c.l.b16 %v435
        %v500 = vunpack.c.l.b16 %v436
        %v501 = vunpack.c.l.b16 %v437
        %v502 = vunpack.c.l.b16 %v438
        %v503 = vunpack.c.l.b16 %v439
        %v504 = vunpack.c.l.b16 %v440
        %v505 = vunpack.c.l.b16 %v441
        %v506 = vunpack.c.l.b16 %v442
        %v507 = vunpack.c.l.b16 %v443
        %v508 = vunpack.c.l.b16 %v444
        %v509 = vunpack.c.l.b16 %v445
        %v510 = vunpack.c.l.b16 %v446
        %v511 = vunpack.c.l.b16 %v447
        %v512 = vunpack.c.l.b16 %v448
        %v513 = vunpack.c.l.b16 %v449
        %v514 = vunpack.c.l.b16 %v450
        %v515 = vunpack.c.l.b16 %v451
        %v516 = vunpack.c.l.b16 %v452
        %v517 = vunpack.c.l.b16 %v453
        %v518 = vunpack.c.l.b16 %v454
        %v519 = vpack.c.b16 %v488, %v487
        %v520 = vpack.c.b16 %v490, %v489
        %v521 = vpack.c.b16 %v492, %v491
        %v522 = vpack.c.b16 %v494, %v493
        %v523 = vpack.c.b16 %v496, %v495
        %v524 = vpack.c.b16 %v498, %v497
        %v525 = vpack.c.b16 %v500, %v499
        %v526 = vpack.c.b16 %v502, %v501
        %v527 = vpack.c.b16 %v504, %v503
        %v528 = vpack.c.b16 %v506, %v505
        %v529 = vpack.c.b16 %v508, %v507
        %v530 = vpack.c.b16 %v510, %v509
        %v531 = vpack.c.b16 %v512, %v511
        %v532 = vpack.c.b16 %v514, %v513
        %v533 = vpack.c.b16 %v516, %v515
        %v534 = vpack.c.b16 %v518, %v517
        %vm535 = vcmask 261120
        %v537 = vsel %vm535, %v519, 0
        %v540 = vsel %vm535, %v520, 0
        %v543 = vsel %vm535, %v521, 0
        %v546 = vsel %vm535, %v522, 0
        %v549 = vsel %vm535, %v523, 0
        %v552 = vsel %vm535, %v524, 0
        %v555 = vsel %vm535, %v525, 0
        %v558 = vsel %vm535, %v526, 0
        %v561 = vsel %vm535, %v527, 0
        %v564 = vsel %vm535, %v528, 0
        %v567 = vsel %vm535, %v529, 0
        %v570 = vsel %vm535, %v530, 0
        %v573 = vsel %vm535, %v531, 0
        %v576 = vsel %vm535, %v532, 0
        %v579 = vsel %vm535, %v533, 0
        %v582 = vsel %vm535, %v534, 0
        %584 = vmatprep.subr.bf16.mxu0 0
        %585 = vmatpush1.bf16.msra.mxu0 %v421
        %586 = vmatprep.subr.bf16.mxu0 0
        %587 = vmatpush1.bf16.msra.mxu0 %v422
        %588 = vmatprep.subr.bf16.mxu0 0
        %589 = vmatpush1.bf16.msra.mxu0 0
        %590 = vmatprep.subr.bf16.mxu0 0
        %591 = vmatpush1.bf16.msra.mxu0 0
        %592 = vmatprep.subr.bf16.mxu0 0
        %593 = vmatpush1.bf16.msra.mxu0 0
        %594 = vmatprep.subr.bf16.mxu0 0
        %595 = vmatpush1.bf16.msra.mxu0 0
        %596 = vmatprep.subr.bf16.mxu0 0
        %597 = vmatpush1.bf16.msra.mxu0 0
        %598 = vmatprep.subr.bf16.mxu0 0
        %599 = vmatpush1.bf16.msra.mxu0 0
        %600 = vmatprep.subr.bf16.mxu0 0
        %601 = vmatpush1.bf16.msra.mxu0 0
        %602 = vmatprep.subr.bf16.mxu0 0
        %603 = vmatpush1.bf16.msra.mxu0 0
        %604 = vmatprep.subr.bf16.mxu0 0
        %605 = vmatpush1.bf16.msra.mxu0 0
        %606 = vmatprep.subr.bf16.mxu0 0
        %607 = vmatpush1.bf16.msra.mxu0 0
        %608 = vmatprep.subr.bf16.mxu0 0
        %609 = vmatpush1.bf16.msra.mxu0 0
        %610 = vmatprep.subr.bf16.mxu0 0
        %611 = vmatpush1.bf16.msra.mxu0 0
        %612 = vmatprep.subr.bf16.mxu0 0
        %613 = vmatpush1.bf16.msra.mxu0 0
        %614 = vmatprep.subr.bf16.mxu0 0
        %615 = vmatpush1.bf16.msra.mxu0 0
        %616 = vmatprep.mubr.bf16.mxu0 0
        %617 = vmatmul.mubr.bf16.gmra.mrb[0].mxu0 %v537
        %v618 = vpop.f32.mrb[0].mxu0
        %v619 = vadd.f32 0.0, %v618
        %v620 = vpop.f32.mrb[0].mxu0
        %v621 = vpop.f32.mrb[0].mxu0
        %v622 = vadd.f32 0.0, %v621
        %v623 = vpop.f32.mrb[0].mxu0
        %624 = vmatprep.mubr.bf16.mxu0 0
        %625 = vmatmul.mubr.bf16.gmra.mrb[0].mxu0 %v540
        %v626 = vpop.f32.mrb[0].mxu0
        %v627 = vadd.f32 0.0, %v626
        %v628 = vpop.f32.mrb[0].mxu0
        %v629 = vpop.f32.mrb[0].mxu0
        %v630 = vadd.f32 0.0, %v629
        %v631 = vpop.f32.mrb[0].mxu0
        %632 = vmatprep.mubr.bf16.mxu0 0
        %633 = vmatmul.mubr.bf16.gmra.mrb[0].mxu0 %v543
        %v634 = vpop.f32.mrb[0].mxu0
        %v635 = vadd.f32 0.0, %v634
        %v636 = vpop.f32.mrb[0].mxu0
        %v637 = vpop.f32.mrb[0].mxu0
        %v638 = vadd.f32 0.0, %v637
        %v639 = vpop.f32.mrb[0].mxu0
        %640 = vmatprep.mubr.bf16.mxu0 0
        %641 = vmatmul.mubr.bf16.gmra.mrb[0].mxu0 %v546
        %v642 = vpop.f32.mrb[0].mxu0
        %v643 = vadd.f32 0.0, %v642
        %v644 = vpop.f32.mrb[0].mxu0
        %v645 = vpop.f32.mrb[0].mxu0
        %v646 = vadd.f32 0.0, %v645
        %v647 = vpop.f32.mrb[0].mxu0
        %648 = vmatprep.mubr.bf16.mxu0 0
        %649 = vmatmul.mubr.bf16.gmra.mrb[0].mxu0 %v549
        %v650 = vpop.f32.mrb[0].mxu0
        %v651 = vadd.f32 0.0, %v650
        %v652 = vpop.f32.mrb[0].mxu0
        %v653 = vpop.f32.mrb[0].mxu0
        %v654 = vadd.f32 0.0, %v653
        %v655 = vpop.f32.mrb[0].mxu0
        %656 = vmatprep.mubr.bf16.mxu0 0
        %657 = vmatmul.mubr.bf16.gmra.mrb[0].mxu0 %v552
        %v658 = vpop.f32.mrb[0].mxu0
        %v659 = vadd.f32 0.0, %v658
        %v660 = vpop.f32.mrb[0].mxu0
        %v661 = vpop.f32.mrb[0].mxu0
        %v662 = vadd.f32 0.0, %v661
        %v663 = vpop.f32.mrb[0].mxu0
        %664 = vmatprep.mubr.bf16.mxu0 0
        %665 = vmatmul.mubr.bf16.gmra.mrb[0].mxu0 %v555
        %v666 = vpop.f32.mrb[0].mxu0
        %v667 = vadd.f32 0.0, %v666
        %v668 = vpop.f32.mrb[0].mxu0
        %v669 = vpop.f32.mrb[0].mxu0
        %v670 = vadd.f32 0.0, %v669
        %v671 = vpop.f32.mrb[0].mxu0
        %672 = vmatprep.mubr.bf16.mxu0 0
        %673 = vmatmul.mubr.bf16.gmra.mrb[0].mxu0 %v558
        %v674 = vpop.f32.mrb[0].mxu0
        %v675 = vadd.f32 0.0, %v674
        %v676 = vpop.f32.mrb[0].mxu0
        %v677 = vpop.f32.mrb[0].mxu0
        %v678 = vadd.f32 0.0, %v677
        %v679 = vpop.f32.mrb[0].mxu0
        %680 = vmatprep.mubr.bf16.mxu0 0
        %681 = vmatmul.mubr.bf16.gmra.mrb[0].mxu0 %v561
        %v682 = vpop.f32.mrb[0].mxu0
        %v683 = vadd.f32 0.0, %v682
        %v684 = vpop.f32.mrb[0].mxu0
        %v685 = vpop.f32.mrb[0].mxu0
        %v686 = vadd.f32 0.0, %v685
        %v687 = vpop.f32.mrb[0].mxu0
        %688 = vmatprep.mubr.bf16.mxu0 0
        %689 = vmatmul.mubr.bf16.gmra.mrb[0].mxu0 %v564
        %v690 = vpop.f32.mrb[0].mxu0
        %v691 = vadd.f32 0.0, %v690
        %v692 = vpop.f32.mrb[0].mxu0
        %v693 = vpop.f32.mrb[0].mxu0
        %v694 = vadd.f32 0.0, %v693
        %v695 = vpop.f32.mrb[0].mxu0
        %696 = vmatprep.mubr.bf16.mxu0 0
        %697 = vmatmul.mubr.bf16.gmra.mrb[0].mxu0 %v567
        %v698 = vpop.f32.mrb[0].mxu0
        %v699 = vadd.f32 0.0, %v698
        %v700 = vpop.f32.mrb[0].mxu0
        %v701 = vpop.f32.mrb[0].mxu0
        %v702 = vadd.f32 0.0, %v701
        %v703 = vpop.f32.mrb[0].mxu0
        %704 = vmatprep.mubr.bf16.mxu0 0
        %705 = vmatmul.mubr.bf16.gmra.mrb[0].mxu0 %v570
        %v706 = vpop.f32.mrb[0].mxu0
        %v707 = vadd.f32 0.0, %v706
        %v708 = vpop.f32.mrb[0].mxu0
        %v709 = vpop.f32.mrb[0].mxu0
        %v710 = vadd.f32 0.0, %v709
        %v711 = vpop.f32.mrb[0].mxu0
        %712 = vmatprep.mubr.bf16.mxu0 0
        %713 = vmatmul.mubr.bf16.gmra.mrb[0].mxu0 %v573
        %v714 = vpop.f32.mrb[0].mxu0
        %v715 = vadd.f32 0.0, %v714
        %v716 = vpop.f32.mrb[0].mxu0
        %v717 = vpop.f32.mrb[0].mxu0
        %v718 = vadd.f32 0.0, %v717
        %v719 = vpop.f32.mrb[0].mxu0
        %720 = vmatprep.mubr.bf16.mxu0 0
        %721 = vmatmul.mubr.bf16.gmra.mrb[0].mxu0 %v576
        %v722 = vpop.f32.mrb[0].mxu0
        %v723 = vadd.f32 0.0, %v722
        %v724 = vpop.f32.mrb[0].mxu0
        %v725 = vpop.f32.mrb[0].mxu0
        %v726 = vadd.f32 0.0, %v725
        %v727 = vpop.f32.mrb[0].mxu0
        %728 = vmatprep.mubr.bf16.mxu0 0
        %729 = vmatmul.mubr.bf16.gmra.mrb[0].mxu0 %v579
        %v730 = vpop.f32.mrb[0].mxu0
        %v731 = vadd.f32 0.0, %v730
        %v732 = vpop.f32.mrb[0].mxu0
        %v733 = vpop.f32.mrb[0].mxu0
        %v734 = vadd.f32 0.0, %v733
        %v735 = vpop.f32.mrb[0].mxu0
        %736 = vmatprep.mubr.bf16.mxu0 0
        %737 = vmatmul.mubr.bf16.gmra.mrb[0].mxu0 %v582
        %v738 = vpop.f32.mrb[0].mxu0
        %v739 = vadd.f32 0.0, %v738
        %v740 = vpop.f32.mrb[0].mxu0
        %v741 = vpop.f32.mrb[0].mxu0
        %v742 = vadd.f32 0.0, %v741
        %v743 = vpop.f32.mrb[0].mxu0
        %744 = vdwg.mxu0
        %v745 = vpack.c.bf16 %v622, %v619
        %v746 = vpack.c.bf16 %v630, %v627
        %v747 = vpack.c.bf16 %v638, %v635
        %v748 = vpack.c.bf16 %v646, %v643
        %v749 = vpack.c.bf16 %v654, %v651
        %v750 = vpack.c.bf16 %v662, %v659
        %v751 = vpack.c.bf16 %v670, %v667
        %v752 = vpack.c.bf16 %v678, %v675
        %v769 = vunpack.c.l.b16 %v389
        %v770 = vunpack.c.l.b16 %v390
        %v771 = vunpack.c.l.b16 %v391
        %v772 = vunpack.c.l.b16 %v392
        %v773 = vunpack.c.l.b16 %v393
        %v774 = vunpack.c.l.b16 %v394
        %v775 = vunpack.c.l.b16 %v395
        %v776 = vunpack.c.l.b16 %v396
        %v777 = vunpack.c.l.b16 %v397
        %v778 = vunpack.c.l.b16 %v398
        %v779 = vunpack.c.l.b16 %v399
        %v780 = vunpack.c.l.b16 %v400
        %v781 = vunpack.c.l.b16 %v401
        %v782 = vunpack.c.l.b16 %v402
        %v783 = vunpack.c.l.b16 %v403
        %v784 = vunpack.c.l.b16 %v404
        %v785 = vpack.c.b16 %v770, %v769
        %v786 = vpack.c.b16 %v772, %v771
        %v787 = vpack.c.b16 %v774, %v773
        %v788 = vpack.c.b16 %v776, %v775
        %v789 = vpack.c.b16 %v778, %v777
        %v790 = vpack.c.b16 %v780, %v779
        %v791 = vpack.c.b16 %v782, %v781
        %v792 = vpack.c.b16 %v784, %v783
        %801 = vmatprep.subr.bf16.mxu0 0
        %802 = vmatpush1.bf16.msra.mxu0 %v785
        %803 = vmatprep.subr.bf16.mxu0 0
        %804 = vmatpush1.bf16.msra.mxu0 %v786
        %805 = vmatprep.subr.bf16.mxu0 0
        %806 = vmatpush1.bf16.msra.mxu0 %v787
        %807 = vmatprep.subr.bf16.mxu0 0
        %808 = vmatpush1.bf16.msra.mxu0 %v788
        %809 = vmatprep.subr.bf16.mxu0 0
        %810 = vmatpush1.bf16.msra.mxu0 %v789
        %811 = vmatprep.subr.bf16.mxu0 0
        %812 = vmatpush1.bf16.msra.mxu0 %v790
        %813 = vmatprep.subr.bf16.mxu0 0
        %814 = vmatpush1.bf16.msra.mxu0 %v791
        %815 = vmatprep.subr.bf16.mxu0 0
        %816 = vmatpush1.bf16.msra.mxu0 %v792
        %817 = vmatprep.subr.bf16.mxu0 0
        %818 = vmatpush1.bf16.msra.mxu0 0
        %819 = vmatprep.subr.bf16.mxu0 0
        %820 = vmatpush1.bf16.msra.mxu0 0
        %821 = vmatprep.subr.bf16.mxu0 0
        %822 = vmatpush1.bf16.msra.mxu0 0
        %823 = vmatprep.subr.bf16.mxu0 0
        %824 = vmatpush1.bf16.msra.mxu0 0
        %825 = vmatprep.subr.bf16.mxu0 0
        %826 = vmatpush1.bf16.msra.mxu0 0
        %827 = vmatprep.subr.bf16.mxu0 0
        %828 = vmatpush1.bf16.msra.mxu0 0
        %829 = vmatprep.subr.bf16.mxu0 0
        %830 = vmatpush1.bf16.msra.mxu0 0
        %831 = vmatprep.subr.bf16.mxu0 0
        %832 = vmatpush1.bf16.msra.mxu0 0
        %833 = vmatprep.mubr.bf16.mxu0 0
        %834 = vmatmul.mubr.bf16.gmra.mrb[0].mxu0 %v745
        %v835 = vpop.f32.mrb[0].mxu0
        %v836 = vadd.f32 %v683, %v835
        %v837 = vpop.f32.mrb[0].mxu0
        %v838 = vpop.f32.mrb[0].mxu0
        %v839 = vadd.f32 %v686, %v838
        %v840 = vpop.f32.mrb[0].mxu0
        %841 = vmatprep.mubr.bf16.mxu0 0
        %842 = vmatmul.mubr.bf16.gmra.mrb[0].mxu0 %v746
        %v843 = vpop.f32.mrb[0].mxu0
        %v844 = vadd.f32 %v691, %v843
        %v845 = vpop.f32.mrb[0].mxu0
        %v846 = vpop.f32.mrb[0].mxu0
        %v847 = vadd.f32 %v694, %v846
        %v848 = vpop.f32.mrb[0].mxu0
        %849 = vmatprep.mubr.bf16.mxu0 0
        %850 = vmatmul.mubr.bf16.gmra.mrb[0].mxu0 %v747
        %v851 = vpop.f32.mrb[0].mxu0
        %v852 = vadd.f32 %v699, %v851
        %v853 = vpop.f32.mrb[0].mxu0
        %v854 = vpop.f32.mrb[0].mxu0
        %v855 = vadd.f32 %v702, %v854
        %v856 = vpop.f32.mrb[0].mxu0
        %857 = vmatprep.mubr.bf16.mxu0 0
        %858 = vmatmul.mubr.bf16.gmra.mrb[0].mxu0 %v748
        %v859 = vpop.f32.mrb[0].mxu0
        %v860 = vadd.f32 %v707, %v859
        %v861 = vpop.f32.mrb[0].mxu0
        %v862 = vpop.f32.mrb[0].mxu0
        %v863 = vadd.f32 %v710, %v862
        %v864 = vpop.f32.mrb[0].mxu0
        %865 = vmatprep.mubr.bf16.mxu0 0
        %866 = vmatmul.mubr.bf16.gmra.mrb[0].mxu0 %v749
        %v867 = vpop.f32.mrb[0].mxu0
        %v868 = vadd.f32 %v715, %v867
        %v869 = vpop.f32.mrb[0].mxu0
        %v870 = vpop.f32.mrb[0].mxu0
        %v871 = vadd.f32 %v718, %v870
        %v872 = vpop.f32.mrb[0].mxu0
        %873 = vmatprep.mubr.bf16.mxu0 0
        %874 = vmatmul.mubr.bf16.gmra.mrb[0].mxu0 %v750
        %v875 = vpop.f32.mrb[0].mxu0
        %v876 = vadd.f32 %v723, %v875
        %v877 = vpop.f32.mrb[0].mxu0
        %v878 = vpop.f32.mrb[0].mxu0
        %v879 = vadd.f32 %v726, %v878
        %v880 = vpop.f32.mrb[0].mxu0
        %881 = vmatprep.mubr.bf16.mxu0 0
        %882 = vmatmul.mubr.bf16.gmra.mrb[0].mxu0 %v751
        %v883 = vpop.f32.mrb[0].mxu0
        %v884 = vadd.f32 %v731, %v883
        %v885 = vpop.f32.mrb[0].mxu0
        %v886 = vpop.f32.mrb[0].mxu0
        %v887 = vadd.f32 %v734, %v886
        %v888 = vpop.f32.mrb[0].mxu0
        %889 = vmatprep.mubr.bf16.mxu0 0
        %890 = vmatmul.mubr.bf16.gmra.mrb[0].mxu0 %v752
        %v891 = vpop.f32.mrb[0].mxu0
        %v892 = vadd.f32 %v739, %v891
        %v893 = vpop.f32.mrb[0].mxu0
        %v894 = vpop.f32.mrb[0].mxu0
        %v895 = vadd.f32 %v742, %v894
        %v896 = vpop.f32.mrb[0].mxu0
        %897 = vdwg.mxu0
        %899 = vset.pattern.permute.xlu0 0
        %900 = vperm.xlu0 %899, %v405
        %v901 = vpop.permute.xlu0 %900
        %904 = vset.pattern.permute.xlu0 0
        %905 = vperm.xlu0 %904, %v406
        %v906 = vpop.permute.xlu0 %905
        %909 = vset.pattern.permute.xlu0 0
        %910 = vperm.xlu0 %909, %v407
        %v911 = vpop.permute.xlu0 %910
        %914 = vset.pattern.permute.xlu0 0
        %915 = vperm.xlu0 %914, %v408
        %v916 = vpop.permute.xlu0 %915
        %919 = vset.pattern.permute.xlu0 0
        %920 = vperm.xlu0 %919, %v409
        %v921 = vpop.permute.xlu0 %920
        %924 = vset.pattern.permute.xlu0 0
        %925 = vperm.xlu0 %924, %v410
        %v926 = vpop.permute.xlu0 %925
        %929 = vset.pattern.permute.xlu0 0
        %930 = vperm.xlu0 %929, %v411
        %v931 = vpop.permute.xlu0 %930
        %934 = vset.pattern.permute.xlu0 0
        %935 = vperm.xlu0 %934, %v412
        %v936 = vpop.permute.xlu0 %935
        %939 = vset.pattern.permute.xlu0 0
        %940 = vperm.xlu0 %939, %v413
        %v941 = vpop.permute.xlu0 %940
        %944 = vset.pattern.permute.xlu0 0
        %945 = vperm.xlu0 %944, %v414
        %v946 = vpop.permute.xlu0 %945
        %949 = vset.pattern.permute.xlu0 0
        %950 = vperm.xlu0 %949, %v415
        %v951 = vpop.permute.xlu0 %950
        %954 = vset.pattern.permute.xlu0 0
        %955 = vperm.xlu0 %954, %v416
        %v956 = vpop.permute.xlu0 %955
        %959 = vset.pattern.permute.xlu0 0
        %960 = vperm.xlu0 %959, %v417
        %v961 = vpop.permute.xlu0 %960
        %964 = vset.pattern.permute.xlu0 0
        %965 = vperm.xlu0 %964, %v418
        %v966 = vpop.permute.xlu0 %965
        %969 = vset.pattern.permute.xlu0 0
        %970 = vperm.xlu0 %969, %v419
        %v971 = vpop.permute.xlu0 %970
        %974 = vset.pattern.permute.xlu0 0
        %975 = vperm.xlu0 %974, %v420
        %v976 = vpop.permute.xlu0 %975
        %v978 = vadd.f32 %v836, %v901
        %v979 = vadd.f32 %v839, %v906
        %v980 = vadd.f32 %v844, %v911
        %v981 = vadd.f32 %v847, %v916
        %v982 = vadd.f32 %v852, %v921
        %v983 = vadd.f32 %v855, %v926
        %v984 = vadd.f32 %v860, %v931
        %v985 = vadd.f32 %v863, %v936
        %v986 = vadd.f32 %v868, %v941
        %v987 = vadd.f32 %v871, %v946
        %v988 = vadd.f32 %v876, %v951
        %v989 = vadd.f32 %v879, %v956
        %v990 = vadd.f32 %v884, %v961
        %v991 = vadd.f32 %v887, %v966
        %v992 = vadd.f32 %v892, %v971
        %v993 = vadd.f32 %v895, %v976
        %v994 = vxor.u32 %v978, 2147483648
        %v995 = vxor.u32 %v979, 2147483648
        %v996 = vxor.u32 %v980, 2147483648
        %v997 = vxor.u32 %v981, 2147483648
        %v998 = vxor.u32 %v982, 2147483648
        %v999 = vxor.u32 %v983, 2147483648
        %v1000 = vxor.u32 %v984, 2147483648
        %v1001 = vxor.u32 %v985, 2147483648
        %v1002 = vmul.f32 %v994, 1.442695
        %v1003 = vpow.pop %v1002
        %v1004 = vmul.f32 %v995, 1.442695
        %v1005 = vpow.pop %v1004
        %v1006 = vmul.f32 %v996, 1.442695
        %v1007 = vpow.pop %v1006
        %v1008 = vmul.f32 %v997, 1.442695
        %v1009 = vpow.pop %v1008
        %v1010 = vmul.f32 %v998, 1.442695
        %v1011 = vpow.pop %v1010
        %v1012 = vmul.f32 %v999, 1.442695
        %v1013 = vpow.pop %v1012
        %v1014 = vmul.f32 %v1000, 1.442695
        %v1015 = vpow.pop %v1014
        %v1016 = vmul.f32 %v1001, 1.442695
        %v1017 = vpow.pop %v1016
        %v1018 = vadd.f32 %v1003, 1.0
        %v1019 = vadd.f32 %v1005, 1.0
        %v1020 = vadd.f32 %v1007, 1.0
        %v1021 = vadd.f32 %v1009, 1.0
        %v1022 = vadd.f32 %v1011, 1.0
        %v1023 = vadd.f32 %v1013, 1.0
        %v1024 = vadd.f32 %v1015, 1.0
        %v1025 = vadd.f32 %v1017, 1.0
        %v1026 = vrcp.pop %v1018
        %v1027 = vmul.f32 1.0, %v1026
        %v1028 = vrcp.pop %v1019
        %v1029 = vmul.f32 1.0, %v1028
        %v1030 = vrcp.pop %v1020
        %v1031 = vmul.f32 1.0, %v1030
        %v1032 = vrcp.pop %v1021
        %v1033 = vmul.f32 1.0, %v1032
        %v1034 = vrcp.pop %v1022
        %v1035 = vmul.f32 1.0, %v1034
        %v1036 = vrcp.pop %v1023
        %v1037 = vmul.f32 1.0, %v1036
        %v1038 = vrcp.pop %v1024
        %v1039 = vmul.f32 1.0, %v1038
        %v1040 = vrcp.pop %v1025
        %v1041 = vmul.f32 1.0, %v1040
        %v1042 = vmul.f32 %v1027, %v990
        %v1043 = vmul.f32 %v1029, %v991
        %v1044 = vmul.f32 %v1031, %v992
        %v1045 = vmul.f32 %v1033, %v993
        %v1046 = vadd.f32 %v986, %v1042
        %v1047 = vadd.f32 %v987, %v1043
        %v1048 = vadd.f32 %v988, %v1044
        %v1049 = vadd.f32 %v989, %v1045
        %v1050 = vtanh.pop %v1046
        %v1051 = vtanh.pop %v1047
        %v1052 = vtanh.pop %v1048
        %v1053 = vtanh.pop %v1049
        %v1054 = vsub.f32 1.0, %v1035
        %v1055 = vsub.f32 1.0, %v1037
        %v1056 = vsub.f32 1.0, %v1039
        %v1057 = vsub.f32 1.0, %v1041
        %v1058 = vmul.f32 %v1054, %v1050
        %v1059 = vmul.f32 %v1055, %v1051
        %v1060 = vmul.f32 %v1056, %v1052
        %v1061 = vmul.f32 %v1057, %v1053
        %v1062 = vmul.f32 %v1035, %v375
        %v1063 = vmul.f32 %v1037, %v378
        %v1064 = vmul.f32 %v1039, %v383
        %v1065 = vmul.f32 %v1041, %v386
        %v1066 = vadd.f32 %v1058, %v1062
        %v1067 = vadd.f32 %v1059, %v1063
        %v1068 = vadd.f32 %v1060, %v1064
        %v1069 = vadd.f32 %v1061, %v1065
        %v1070 = vpack.c.bf16 %v1067, %v1066
        %v1071 = vpack.c.bf16 %v1069, %v1068
        %s1072 = scalar_lea.vmem %s4, 128
        %v1073 = vld [vmem:[%s1072] sm:$0xf]
        %v1074 = vld [vmem:[%s1072 + $0x4] sm:$0xf]
        %v1075 = vld [vmem:[%s1072 + $0x8] sm:$0xf]
        %v1076 = vld [vmem:[%s1072 + $0xc] sm:$0xf]
        %v1077 = vld [vmem:[%s1072 + $0x10] sm:$0xf]
        %v1078 = vld [vmem:[%s1072 + $0x14] sm:$0xf]
        %v1079 = vld [vmem:[%s1072 + $0x18] sm:$0xf]
        %v1080 = vld [vmem:[%s1072 + $0x1c] sm:$0xf]
        %v1081 = vld [vmem:[%s1072 + $0x20] sm:$0xf]
        %v1082 = vld [vmem:[%s1072 + $0x24] sm:$0xf]
        %v1083 = vld [vmem:[%s1072 + $0x28] sm:$0xf]
        %v1084 = vld [vmem:[%s1072 + $0x2c] sm:$0xf]
        %v1085 = vld [vmem:[%s1072 + $0x30] sm:$0xf]
        %v1086 = vld [vmem:[%s1072 + $0x34] sm:$0xf]
        %v1087 = vld [vmem:[%s1072 + $0x38] sm:$0xf]
        %v1088 = vld [vmem:[%s1072 + $0x3c] sm:$0xf]
        %v1089 = vld [vmem:[%s1072 + $0x40] sm:$0xf]
        %v1090 = vld [vmem:[%s1072 + $0x44] sm:$0xf]
        %v1091 = vld [vmem:[%s1072 + $0x48] sm:$0xf]
        %v1092 = vld [vmem:[%s1072 + $0x4c] sm:$0xf]
        %v1093 = vld [vmem:[%s1072 + $0x50] sm:$0xf]
        %v1094 = vld [vmem:[%s1072 + $0x54] sm:$0xf]
        %v1095 = vld [vmem:[%s1072 + $0x58] sm:$0xf]
        %v1096 = vld [vmem:[%s1072 + $0x5c] sm:$0xf]
        %v1097 = vld [vmem:[%s1072 + $0x60] sm:$0xf]
        %v1098 = vld [vmem:[%s1072 + $0x64] sm:$0xf]
        %v1099 = vld [vmem:[%s1072 + $0x68] sm:$0xf]
        %v1100 = vld [vmem:[%s1072 + $0x6c] sm:$0xf]
        %v1101 = vld [vmem:[%s1072 + $0x70] sm:$0xf]
        %v1102 = vld [vmem:[%s1072 + $0x74] sm:$0xf]
        %v1103 = vld [vmem:[%s1072 + $0x78] sm:$0xf]
        %v1104 = vld [vmem:[%s1072 + $0x7c] sm:$0xf]
        %v1137 = vunpack.c.l.b16 %v1073
        %v1138 = vunpack.c.l.b16 %v1074
        %v1139 = vunpack.c.l.b16 %v1075
        %v1140 = vunpack.c.l.b16 %v1076
        %v1141 = vunpack.c.l.b16 %v1077
        %v1142 = vunpack.c.l.b16 %v1078
        %v1143 = vunpack.c.l.b16 %v1079
        %v1144 = vunpack.c.l.b16 %v1080
        %v1145 = vunpack.c.l.b16 %v1081
        %v1146 = vunpack.c.l.b16 %v1082
        %v1147 = vunpack.c.l.b16 %v1083
        %v1148 = vunpack.c.l.b16 %v1084
        %v1149 = vunpack.c.l.b16 %v1085
        %v1150 = vunpack.c.l.b16 %v1086
        %v1151 = vunpack.c.l.b16 %v1087
        %v1152 = vunpack.c.l.b16 %v1088
        %v1153 = vunpack.c.l.b16 %v1089
        %v1154 = vunpack.c.l.b16 %v1090
        %v1155 = vunpack.c.l.b16 %v1091
        %v1156 = vunpack.c.l.b16 %v1092
        %v1157 = vunpack.c.l.b16 %v1093
        %v1158 = vunpack.c.l.b16 %v1094
        %v1159 = vunpack.c.l.b16 %v1095
        %v1160 = vunpack.c.l.b16 %v1096
        %v1161 = vunpack.c.l.b16 %v1097
        %v1162 = vunpack.c.l.b16 %v1098
        %v1163 = vunpack.c.l.b16 %v1099
        %v1164 = vunpack.c.l.b16 %v1100
        %v1165 = vunpack.c.l.b16 %v1101
        %v1166 = vunpack.c.l.b16 %v1102
        %v1167 = vunpack.c.l.b16 %v1103
        %v1168 = vunpack.c.l.b16 %v1104
        %v1169 = vpack.c.b16 %v1138, %v1137
        %v1170 = vpack.c.b16 %v1140, %v1139
        %v1171 = vpack.c.b16 %v1142, %v1141
        %v1172 = vpack.c.b16 %v1144, %v1143
        %v1173 = vpack.c.b16 %v1146, %v1145
        %v1174 = vpack.c.b16 %v1148, %v1147
        %v1175 = vpack.c.b16 %v1150, %v1149
        %v1176 = vpack.c.b16 %v1152, %v1151
        %v1177 = vpack.c.b16 %v1154, %v1153
        %v1178 = vpack.c.b16 %v1156, %v1155
        %v1179 = vpack.c.b16 %v1158, %v1157
        %v1180 = vpack.c.b16 %v1160, %v1159
        %v1181 = vpack.c.b16 %v1162, %v1161
        %v1182 = vpack.c.b16 %v1164, %v1163
        %v1183 = vpack.c.b16 %v1166, %v1165
        %v1184 = vpack.c.b16 %v1168, %v1167
        %v1186 = vsel %vm535, %v1169, 0
        %v1189 = vsel %vm535, %v1170, 0
        %v1192 = vsel %vm535, %v1171, 0
        %v1195 = vsel %vm535, %v1172, 0
        %v1198 = vsel %vm535, %v1173, 0
        %v1201 = vsel %vm535, %v1174, 0
        %v1204 = vsel %vm535, %v1175, 0
        %v1207 = vsel %vm535, %v1176, 0
        %v1210 = vsel %vm535, %v1177, 0
        %v1213 = vsel %vm535, %v1178, 0
        %v1216 = vsel %vm535, %v1179, 0
        %v1219 = vsel %vm535, %v1180, 0
        %v1222 = vsel %vm535, %v1181, 0
        %v1225 = vsel %vm535, %v1182, 0
        %v1228 = vsel %vm535, %v1183, 0
        %v1231 = vsel %vm535, %v1184, 0
        %1233 = vmatprep.subr.bf16.mxu0 0
        %1234 = vmatpush1.bf16.msra.mxu0 %v1070
        %1235 = vmatprep.subr.bf16.mxu0 0
        %1236 = vmatpush1.bf16.msra.mxu0 %v1071
        %1237 = vmatprep.subr.bf16.mxu0 0
        %1238 = vmatpush1.bf16.msra.mxu0 0
        %1239 = vmatprep.subr.bf16.mxu0 0
        %1240 = vmatpush1.bf16.msra.mxu0 0
        %1241 = vmatprep.subr.bf16.mxu0 0
        %1242 = vmatpush1.bf16.msra.mxu0 0
        %1243 = vmatprep.subr.bf16.mxu0 0
        %1244 = vmatpush1.bf16.msra.mxu0 0
        %1245 = vmatprep.subr.bf16.mxu0 0
        %1246 = vmatpush1.bf16.msra.mxu0 0
        %1247 = vmatprep.subr.bf16.mxu0 0
        %1248 = vmatpush1.bf16.msra.mxu0 0
        %1249 = vmatprep.subr.bf16.mxu0 0
        %1250 = vmatpush1.bf16.msra.mxu0 0
        %1251 = vmatprep.subr.bf16.mxu0 0
        %1252 = vmatpush1.bf16.msra.mxu0 0
        %1253 = vmatprep.subr.bf16.mxu0 0
        %1254 = vmatpush1.bf16.msra.mxu0 0
        %1255 = vmatprep.subr.bf16.mxu0 0
        %1256 = vmatpush1.bf16.msra.mxu0 0
        %1257 = vmatprep.subr.bf16.mxu0 0
        %1258 = vmatpush1.bf16.msra.mxu0 0
        %1259 = vmatprep.subr.bf16.mxu0 0
        %1260 = vmatpush1.bf16.msra.mxu0 0
        %1261 = vmatprep.subr.bf16.mxu0 0
        %1262 = vmatpush1.bf16.msra.mxu0 0
        %1263 = vmatprep.subr.bf16.mxu0 0
        %1264 = vmatpush1.bf16.msra.mxu0 0
        %1265 = vmatprep.mubr.bf16.mxu0 0
        %1266 = vmatmul.mubr.bf16.gmra.mrb[0].mxu0 %v1186
        %v1267 = vpop.f32.mrb[0].mxu0
        %v1268 = vadd.f32 0.0, %v1267
        %v1269 = vpop.f32.mrb[0].mxu0
        %v1270 = vpop.f32.mrb[0].mxu0
        %v1271 = vadd.f32 0.0, %v1270
        %v1272 = vpop.f32.mrb[0].mxu0
        %1273 = vmatprep.mubr.bf16.mxu0 0
        %1274 = vmatmul.mubr.bf16.gmra.mrb[0].mxu0 %v1189
        %v1275 = vpop.f32.mrb[0].mxu0
        %v1276 = vadd.f32 0.0, %v1275
        %v1277 = vpop.f32.mrb[0].mxu0
        %v1278 = vpop.f32.mrb[0].mxu0
        %v1279 = vadd.f32 0.0, %v1278
        %v1280 = vpop.f32.mrb[0].mxu0
        %1281 = vmatprep.mubr.bf16.mxu0 0
        %1282 = vmatmul.mubr.bf16.gmra.mrb[0].mxu0 %v1192
        %v1283 = vpop.f32.mrb[0].mxu0
        %v1284 = vadd.f32 0.0, %v1283
        %v1285 = vpop.f32.mrb[0].mxu0
        %v1286 = vpop.f32.mrb[0].mxu0
        %v1287 = vadd.f32 0.0, %v1286
        %v1288 = vpop.f32.mrb[0].mxu0
        %1289 = vmatprep.mubr.bf16.mxu0 0
        %1290 = vmatmul.mubr.bf16.gmra.mrb[0].mxu0 %v1195
        %v1291 = vpop.f32.mrb[0].mxu0
        %v1292 = vadd.f32 0.0, %v1291
        %v1293 = vpop.f32.mrb[0].mxu0
        %v1294 = vpop.f32.mrb[0].mxu0
        %v1295 = vadd.f32 0.0, %v1294
        %v1296 = vpop.f32.mrb[0].mxu0
        %1297 = vmatprep.mubr.bf16.mxu0 0
        %1298 = vmatmul.mubr.bf16.gmra.mrb[0].mxu0 %v1198
        %v1299 = vpop.f32.mrb[0].mxu0
        %v1300 = vadd.f32 0.0, %v1299
        %v1301 = vpop.f32.mrb[0].mxu0
        %v1302 = vpop.f32.mrb[0].mxu0
        %v1303 = vadd.f32 0.0, %v1302
        %v1304 = vpop.f32.mrb[0].mxu0
        %1305 = vmatprep.mubr.bf16.mxu0 0
        %1306 = vmatmul.mubr.bf16.gmra.mrb[0].mxu0 %v1201
        %v1307 = vpop.f32.mrb[0].mxu0
        %v1308 = vadd.f32 0.0, %v1307
        %v1309 = vpop.f32.mrb[0].mxu0
        %v1310 = vpop.f32.mrb[0].mxu0
        %v1311 = vadd.f32 0.0, %v1310
        %v1312 = vpop.f32.mrb[0].mxu0
        %1313 = vmatprep.mubr.bf16.mxu0 0
        %1314 = vmatmul.mubr.bf16.gmra.mrb[0].mxu0 %v1204
        %v1315 = vpop.f32.mrb[0].mxu0
        %v1316 = vadd.f32 0.0, %v1315
        %v1317 = vpop.f32.mrb[0].mxu0
        %v1318 = vpop.f32.mrb[0].mxu0
        %v1319 = vadd.f32 0.0, %v1318
        %v1320 = vpop.f32.mrb[0].mxu0
        %1321 = vmatprep.mubr.bf16.mxu0 0
        %1322 = vmatmul.mubr.bf16.gmra.mrb[0].mxu0 %v1207
        %v1323 = vpop.f32.mrb[0].mxu0
        %v1324 = vadd.f32 0.0, %v1323
        %v1325 = vpop.f32.mrb[0].mxu0
        %v1326 = vpop.f32.mrb[0].mxu0
        %v1327 = vadd.f32 0.0, %v1326
        %v1328 = vpop.f32.mrb[0].mxu0
        %1329 = vmatprep.mubr.bf16.mxu0 0
        %1330 = vmatmul.mubr.bf16.gmra.mrb[0].mxu0 %v1210
        %v1331 = vpop.f32.mrb[0].mxu0
        %v1332 = vadd.f32 0.0, %v1331
        %v1333 = vpop.f32.mrb[0].mxu0
        %v1334 = vpop.f32.mrb[0].mxu0
        %v1335 = vadd.f32 0.0, %v1334
        %v1336 = vpop.f32.mrb[0].mxu0
        %1337 = vmatprep.mubr.bf16.mxu0 0
        %1338 = vmatmul.mubr.bf16.gmra.mrb[0].mxu0 %v1213
        %v1339 = vpop.f32.mrb[0].mxu0
        %v1340 = vadd.f32 0.0, %v1339
        %v1341 = vpop.f32.mrb[0].mxu0
        %v1342 = vpop.f32.mrb[0].mxu0
        %v1343 = vadd.f32 0.0, %v1342
        %v1344 = vpop.f32.mrb[0].mxu0
        %1345 = vmatprep.mubr.bf16.mxu0 0
        %1346 = vmatmul.mubr.bf16.gmra.mrb[0].mxu0 %v1216
        %v1347 = vpop.f32.mrb[0].mxu0
        %v1348 = vadd.f32 0.0, %v1347
        %v1349 = vpop.f32.mrb[0].mxu0
        %v1350 = vpop.f32.mrb[0].mxu0
        %v1351 = vadd.f32 0.0, %v1350
        %v1352 = vpop.f32.mrb[0].mxu0
        %1353 = vmatprep.mubr.bf16.mxu0 0
        %1354 = vmatmul.mubr.bf16.gmra.mrb[0].mxu0 %v1219
        %v1355 = vpop.f32.mrb[0].mxu0
        %v1356 = vadd.f32 0.0, %v1355
        %v1357 = vpop.f32.mrb[0].mxu0
        %v1358 = vpop.f32.mrb[0].mxu0
        %v1359 = vadd.f32 0.0, %v1358
        %v1360 = vpop.f32.mrb[0].mxu0
        %1361 = vmatprep.mubr.bf16.mxu0 0
        %1362 = vmatmul.mubr.bf16.gmra.mrb[0].mxu0 %v1222
        %v1363 = vpop.f32.mrb[0].mxu0
        %v1364 = vadd.f32 0.0, %v1363
        %v1365 = vpop.f32.mrb[0].mxu0
        %v1366 = vpop.f32.mrb[0].mxu0
        %v1367 = vadd.f32 0.0, %v1366
        %v1368 = vpop.f32.mrb[0].mxu0
        %1369 = vmatprep.mubr.bf16.mxu0 0
        %1370 = vmatmul.mubr.bf16.gmra.mrb[0].mxu0 %v1225
        %v1371 = vpop.f32.mrb[0].mxu0
        %v1372 = vadd.f32 0.0, %v1371
        %v1373 = vpop.f32.mrb[0].mxu0
        %v1374 = vpop.f32.mrb[0].mxu0
        %v1375 = vadd.f32 0.0, %v1374
        %v1376 = vpop.f32.mrb[0].mxu0
        %1377 = vmatprep.mubr.bf16.mxu0 0
        %1378 = vmatmul.mubr.bf16.gmra.mrb[0].mxu0 %v1228
        %v1379 = vpop.f32.mrb[0].mxu0
        %v1380 = vadd.f32 0.0, %v1379
        %v1381 = vpop.f32.mrb[0].mxu0
        %v1382 = vpop.f32.mrb[0].mxu0
        %v1383 = vadd.f32 0.0, %v1382
        %v1384 = vpop.f32.mrb[0].mxu0
        %1385 = vmatprep.mubr.bf16.mxu0 0
        %1386 = vmatmul.mubr.bf16.gmra.mrb[0].mxu0 %v1231
        %v1387 = vpop.f32.mrb[0].mxu0
        %v1388 = vadd.f32 0.0, %v1387
        %v1389 = vpop.f32.mrb[0].mxu0
        %v1390 = vpop.f32.mrb[0].mxu0
        %v1391 = vadd.f32 0.0, %v1390
        %v1392 = vpop.f32.mrb[0].mxu0
        %1393 = vdwg.mxu0
        %v1394 = vpack.c.bf16 %v1271, %v1268
        %v1395 = vpack.c.bf16 %v1279, %v1276
        %v1396 = vpack.c.bf16 %v1287, %v1284
        %v1397 = vpack.c.bf16 %v1295, %v1292
        %v1398 = vpack.c.bf16 %v1303, %v1300
        %v1399 = vpack.c.bf16 %v1311, %v1308
        %v1400 = vpack.c.bf16 %v1319, %v1316
        %v1401 = vpack.c.bf16 %v1327, %v1324
        %1402 = vmatprep.subr.bf16.mxu0 0
        %1403 = vmatpush1.bf16.msra.mxu0 %v785
        %1404 = vmatprep.subr.bf16.mxu0 0
        %1405 = vmatpush1.bf16.msra.mxu0 %v786
        %1406 = vmatprep.subr.bf16.mxu0 0
        %1407 = vmatpush1.bf16.msra.mxu0 %v787
        %1408 = vmatprep.subr.bf16.mxu0 0
        %1409 = vmatpush1.bf16.msra.mxu0 %v788
        %1410 = vmatprep.subr.bf16.mxu0 0
        %1411 = vmatpush1.bf16.msra.mxu0 %v789
        %1412 = vmatprep.subr.bf16.mxu0 0
        %1413 = vmatpush1.bf16.msra.mxu0 %v790
        %1414 = vmatprep.subr.bf16.mxu0 0
        %1415 = vmatpush1.bf16.msra.mxu0 %v791
        %1416 = vmatprep.subr.bf16.mxu0 0
        %1417 = vmatpush1.bf16.msra.mxu0 %v792
        %1418 = vmatprep.subr.bf16.mxu0 0
        %1419 = vmatpush1.bf16.msra.mxu0 0
        %1420 = vmatprep.subr.bf16.mxu0 0
        %1421 = vmatpush1.bf16.msra.mxu0 0
        %1422 = vmatprep.subr.bf16.mxu0 0
        %1423 = vmatpush1.bf16.msra.mxu0 0
        %1424 = vmatprep.subr.bf16.mxu0 0
        %1425 = vmatpush1.bf16.msra.mxu0 0
        %1426 = vmatprep.subr.bf16.mxu0 0
        %1427 = vmatpush1.bf16.msra.mxu0 0
        %1428 = vmatprep.subr.bf16.mxu0 0
        %1429 = vmatpush1.bf16.msra.mxu0 0
        %1430 = vmatprep.subr.bf16.mxu0 0
        %1431 = vmatpush1.bf16.msra.mxu0 0
        %1432 = vmatprep.subr.bf16.mxu0 0
        %1433 = vmatpush1.bf16.msra.mxu0 0
        %1434 = vmatprep.mubr.bf16.mxu0 0
        %1435 = vmatmul.mubr.bf16.gmra.mrb[0].mxu0 %v1394
        %v1436 = vpop.f32.mrb[0].mxu0
        %v1437 = vadd.f32 %v1332, %v1436
        %v1438 = vpop.f32.mrb[0].mxu0
        %v1439 = vpop.f32.mrb[0].mxu0
        %v1440 = vadd.f32 %v1335, %v1439
        %v1441 = vpop.f32.mrb[0].mxu0
        %1442 = vmatprep.mubr.bf16.mxu0 0
        %1443 = vmatmul.mubr.bf16.gmra.mrb[0].mxu0 %v1395
        %v1444 = vpop.f32.mrb[0].mxu0
        %v1445 = vadd.f32 %v1340, %v1444
        %v1446 = vpop.f32.mrb[0].mxu0
        %v1447 = vpop.f32.mrb[0].mxu0
        %v1448 = vadd.f32 %v1343, %v1447
        %v1449 = vpop.f32.mrb[0].mxu0
        %1450 = vmatprep.mubr.bf16.mxu0 0
        %1451 = vmatmul.mubr.bf16.gmra.mrb[0].mxu0 %v1396
        %v1452 = vpop.f32.mrb[0].mxu0
        %v1453 = vadd.f32 %v1348, %v1452
        %v1454 = vpop.f32.mrb[0].mxu0
        %v1455 = vpop.f32.mrb[0].mxu0
        %v1456 = vadd.f32 %v1351, %v1455
        %v1457 = vpop.f32.mrb[0].mxu0
        %1458 = vmatprep.mubr.bf16.mxu0 0
        %1459 = vmatmul.mubr.bf16.gmra.mrb[0].mxu0 %v1397
        %v1460 = vpop.f32.mrb[0].mxu0
        %v1461 = vadd.f32 %v1356, %v1460
        %v1462 = vpop.f32.mrb[0].mxu0
        %v1463 = vpop.f32.mrb[0].mxu0
        %v1464 = vadd.f32 %v1359, %v1463
        %v1465 = vpop.f32.mrb[0].mxu0
        %1466 = vmatprep.mubr.bf16.mxu0 0
        %1467 = vmatmul.mubr.bf16.gmra.mrb[0].mxu0 %v1398
        %v1468 = vpop.f32.mrb[0].mxu0
        %v1469 = vadd.f32 %v1364, %v1468
        %v1470 = vpop.f32.mrb[0].mxu0
        %v1471 = vpop.f32.mrb[0].mxu0
        %v1472 = vadd.f32 %v1367, %v1471
        %v1473 = vpop.f32.mrb[0].mxu0
        %1474 = vmatprep.mubr.bf16.mxu0 0
        %1475 = vmatmul.mubr.bf16.gmra.mrb[0].mxu0 %v1399
        %v1476 = vpop.f32.mrb[0].mxu0
        %v1477 = vadd.f32 %v1372, %v1476
        %v1478 = vpop.f32.mrb[0].mxu0
        %v1479 = vpop.f32.mrb[0].mxu0
        %v1480 = vadd.f32 %v1375, %v1479
        %v1481 = vpop.f32.mrb[0].mxu0
        %1482 = vmatprep.mubr.bf16.mxu0 0
        %1483 = vmatmul.mubr.bf16.gmra.mrb[0].mxu0 %v1400
        %v1484 = vpop.f32.mrb[0].mxu0
        %v1485 = vadd.f32 %v1380, %v1484
        %v1486 = vpop.f32.mrb[0].mxu0
        %v1487 = vpop.f32.mrb[0].mxu0
        %v1488 = vadd.f32 %v1383, %v1487
        %v1489 = vpop.f32.mrb[0].mxu0
        %1490 = vmatprep.mubr.bf16.mxu0 0
        %1491 = vmatmul.mubr.bf16.gmra.mrb[0].mxu0 %v1401
        %v1492 = vpop.f32.mrb[0].mxu0
        %v1493 = vadd.f32 %v1388, %v1492
        %v1494 = vpop.f32.mrb[0].mxu0
        %v1495 = vpop.f32.mrb[0].mxu0
        %v1496 = vadd.f32 %v1391, %v1495
        %v1497 = vpop.f32.mrb[0].mxu0
        %1498 = vdwg.mxu0
        %v1499 = vadd.f32 %v1437, %v901
        %v1500 = vadd.f32 %v1440, %v906
        %v1501 = vadd.f32 %v1445, %v911
        %v1502 = vadd.f32 %v1448, %v916
        %v1503 = vadd.f32 %v1453, %v921
        %v1504 = vadd.f32 %v1456, %v926
        %v1505 = vadd.f32 %v1461, %v931
        %v1506 = vadd.f32 %v1464, %v936
        %v1507 = vadd.f32 %v1469, %v941
        %v1508 = vadd.f32 %v1472, %v946
        %v1509 = vadd.f32 %v1477, %v951
        %v1510 = vadd.f32 %v1480, %v956
        %v1511 = vadd.f32 %v1485, %v961
        %v1512 = vadd.f32 %v1488, %v966
        %v1513 = vadd.f32 %v1493, %v971
        %v1514 = vadd.f32 %v1496, %v976
        %v1515 = vxor.u32 %v1499, 2147483648
        %v1516 = vxor.u32 %v1500, 2147483648
        %v1517 = vxor.u32 %v1501, 2147483648
        %v1518 = vxor.u32 %v1502, 2147483648
        %v1519 = vxor.u32 %v1503, 2147483648
        %v1520 = vxor.u32 %v1504, 2147483648
        %v1521 = vxor.u32 %v1505, 2147483648
        %v1522 = vxor.u32 %v1506, 2147483648
        %v1523 = vmul.f32 %v1515, 1.442695
        %v1524 = vpow.pop %v1523
        %v1525 = vmul.f32 %v1516, 1.442695
        %v1526 = vpow.pop %v1525
        %v1527 = vmul.f32 %v1517, 1.442695
        %v1528 = vpow.pop %v1527
        %v1529 = vmul.f32 %v1518, 1.442695
        %v1530 = vpow.pop %v1529
        %v1531 = vmul.f32 %v1519, 1.442695
        %v1532 = vpow.pop %v1531
        %v1533 = vmul.f32 %v1520, 1.442695
        %v1534 = vpow.pop %v1533
        %v1535 = vmul.f32 %v1521, 1.442695
        %v1536 = vpow.pop %v1535
        %v1537 = vmul.f32 %v1522, 1.442695
        %v1538 = vpow.pop %v1537
        %v1539 = vadd.f32 %v1524, 1.0
        %v1540 = vadd.f32 %v1526, 1.0
        %v1541 = vadd.f32 %v1528, 1.0
        %v1542 = vadd.f32 %v1530, 1.0
        %v1543 = vadd.f32 %v1532, 1.0
        %v1544 = vadd.f32 %v1534, 1.0
        %v1545 = vadd.f32 %v1536, 1.0
        %v1546 = vadd.f32 %v1538, 1.0
        %v1547 = vrcp.pop %v1539
        %v1548 = vmul.f32 1.0, %v1547
        %v1549 = vrcp.pop %v1540
        %v1550 = vmul.f32 1.0, %v1549
        %v1551 = vrcp.pop %v1541
        %v1552 = vmul.f32 1.0, %v1551
        %v1553 = vrcp.pop %v1542
        %v1554 = vmul.f32 1.0, %v1553
        %v1555 = vrcp.pop %v1543
        %v1556 = vmul.f32 1.0, %v1555
        %v1557 = vrcp.pop %v1544
        %v1558 = vmul.f32 1.0, %v1557
        %v1559 = vrcp.pop %v1545
        %v1560 = vmul.f32 1.0, %v1559
        %v1561 = vrcp.pop %v1546
        %v1562 = vmul.f32 1.0, %v1561
        %v1563 = vmul.f32 %v1548, %v1511
        %v1564 = vmul.f32 %v1550, %v1512
        %v1565 = vmul.f32 %v1552, %v1513
        %v1566 = vmul.f32 %v1554, %v1514
        %v1567 = vadd.f32 %v1507, %v1563
        %v1568 = vadd.f32 %v1508, %v1564
        %v1569 = vadd.f32 %v1509, %v1565
        %v1570 = vadd.f32 %v1510, %v1566
        %v1571 = vtanh.pop %v1567
        %v1572 = vtanh.pop %v1568
        %v1573 = vtanh.pop %v1569
        %v1574 = vtanh.pop %v1570
        %v1575 = vsub.f32 1.0, %v1556
        %v1576 = vsub.f32 1.0, %v1558
        %v1577 = vsub.f32 1.0, %v1560
        %v1578 = vsub.f32 1.0, %v1562
        %v1579 = vmul.f32 %v1575, %v1571
        %v1580 = vmul.f32 %v1576, %v1572
        %v1581 = vmul.f32 %v1577, %v1573
        %v1582 = vmul.f32 %v1578, %v1574
        %v1583 = vmul.f32 %v1556, %v1066
        %v1584 = vmul.f32 %v1558, %v1067
        %v1585 = vmul.f32 %v1560, %v1068
        %v1586 = vmul.f32 %v1562, %v1069
        %v1587 = vadd.f32 %v1579, %v1583
        %v1588 = vadd.f32 %v1580, %v1584
        %v1589 = vadd.f32 %v1581, %v1585
        %v1590 = vadd.f32 %v1582, %v1586
        %v1591 = vpack.c.bf16 %v1588, %v1587
        %v1592 = vpack.c.bf16 %v1590, %v1589
        %s1593 = scalar_lea.vmem %s4, 256
        %v1594 = vld [vmem:[%s1593] sm:$0xf]
        %v1595 = vld [vmem:[%s1593 + $0x4] sm:$0xf]
        %v1596 = vld [vmem:[%s1593 + $0x8] sm:$0xf]
        %v1597 = vld [vmem:[%s1593 + $0xc] sm:$0xf]
        %v1598 = vld [vmem:[%s1593 + $0x10] sm:$0xf]
        %v1599 = vld [vmem:[%s1593 + $0x14] sm:$0xf]
        %v1600 = vld [vmem:[%s1593 + $0x18] sm:$0xf]
        %v1601 = vld [vmem:[%s1593 + $0x1c] sm:$0xf]
        %v1602 = vld [vmem:[%s1593 + $0x20] sm:$0xf]
        %v1603 = vld [vmem:[%s1593 + $0x24] sm:$0xf]
        %v1604 = vld [vmem:[%s1593 + $0x28] sm:$0xf]
        %v1605 = vld [vmem:[%s1593 + $0x2c] sm:$0xf]
        %v1606 = vld [vmem:[%s1593 + $0x30] sm:$0xf]
        %v1607 = vld [vmem:[%s1593 + $0x34] sm:$0xf]
        %v1608 = vld [vmem:[%s1593 + $0x38] sm:$0xf]
        %v1609 = vld [vmem:[%s1593 + $0x3c] sm:$0xf]
        %v1610 = vld [vmem:[%s1593 + $0x40] sm:$0xf]
        %v1611 = vld [vmem:[%s1593 + $0x44] sm:$0xf]
        %v1612 = vld [vmem:[%s1593 + $0x48] sm:$0xf]
        %v1613 = vld [vmem:[%s1593 + $0x4c] sm:$0xf]
        %v1614 = vld [vmem:[%s1593 + $0x50] sm:$0xf]
        %v1615 = vld [vmem:[%s1593 + $0x54] sm:$0xf]
        %v1616 = vld [vmem:[%s1593 + $0x58] sm:$0xf]
        %v1617 = vld [vmem:[%s1593 + $0x5c] sm:$0xf]
        %v1618 = vld [vmem:[%s1593 + $0x60] sm:$0xf]
        %v1619 = vld [vmem:[%s1593 + $0x64] sm:$0xf]
        %v1620 = vld [vmem:[%s1593 + $0x68] sm:$0xf]
        %v1621 = vld [vmem:[%s1593 + $0x6c] sm:$0xf]
        %v1622 = vld [vmem:[%s1593 + $0x70] sm:$0xf]
        %v1623 = vld [vmem:[%s1593 + $0x74] sm:$0xf]
        %v1624 = vld [vmem:[%s1593 + $0x78] sm:$0xf]
        %v1625 = vld [vmem:[%s1593 + $0x7c] sm:$0xf]
        %v1658 = vunpack.c.l.b16 %v1594
        %v1659 = vunpack.c.l.b16 %v1595
        %v1660 = vunpack.c.l.b16 %v1596
        %v1661 = vunpack.c.l.b16 %v1597
        %v1662 = vunpack.c.l.b16 %v1598
        %v1663 = vunpack.c.l.b16 %v1599
        %v1664 = vunpack.c.l.b16 %v1600
        %v1665 = vunpack.c.l.b16 %v1601
        %v1666 = vunpack.c.l.b16 %v1602
        %v1667 = vunpack.c.l.b16 %v1603
        %v1668 = vunpack.c.l.b16 %v1604
        %v1669 = vunpack.c.l.b16 %v1605
        %v1670 = vunpack.c.l.b16 %v1606
        %v1671 = vunpack.c.l.b16 %v1607
        %v1672 = vunpack.c.l.b16 %v1608
        %v1673 = vunpack.c.l.b16 %v1609
        %v1674 = vunpack.c.l.b16 %v1610
        %v1675 = vunpack.c.l.b16 %v1611
        %v1676 = vunpack.c.l.b16 %v1612
        %v1677 = vunpack.c.l.b16 %v1613
        %v1678 = vunpack.c.l.b16 %v1614
        %v1679 = vunpack.c.l.b16 %v1615
        %v1680 = vunpack.c.l.b16 %v1616
        %v1681 = vunpack.c.l.b16 %v1617
        %v1682 = vunpack.c.l.b16 %v1618
        %v1683 = vunpack.c.l.b16 %v1619
        %v1684 = vunpack.c.l.b16 %v1620
        %v1685 = vunpack.c.l.b16 %v1621
        %v1686 = vunpack.c.l.b16 %v1622
        %v1687 = vunpack.c.l.b16 %v1623
        %v1688 = vunpack.c.l.b16 %v1624
        %v1689 = vunpack.c.l.b16 %v1625
        %v1690 = vpack.c.b16 %v1659, %v1658
        %v1691 = vpack.c.b16 %v1661, %v1660
        %v1692 = vpack.c.b16 %v1663, %v1662
        %v1693 = vpack.c.b16 %v1665, %v1664
        %v1694 = vpack.c.b16 %v1667, %v1666
        %v1695 = vpack.c.b16 %v1669, %v1668
        %v1696 = vpack.c.b16 %v1671, %v1670
        %v1697 = vpack.c.b16 %v1673, %v1672
        %v1698 = vpack.c.b16 %v1675, %v1674
        %v1699 = vpack.c.b16 %v1677, %v1676
        %v1700 = vpack.c.b16 %v1679, %v1678
        %v1701 = vpack.c.b16 %v1681, %v1680
        %v1702 = vpack.c.b16 %v1683, %v1682
        %v1703 = vpack.c.b16 %v1685, %v1684
        %v1704 = vpack.c.b16 %v1687, %v1686
        %v1705 = vpack.c.b16 %v1689, %v1688
        %v1707 = vsel %vm535, %v1690, 0
        %v1710 = vsel %vm535, %v1691, 0
        %v1713 = vsel %vm535, %v1692, 0
        %v1716 = vsel %vm535, %v1693, 0
        %v1719 = vsel %vm535, %v1694, 0
        %v1722 = vsel %vm535, %v1695, 0
        %v1725 = vsel %vm535, %v1696, 0
        %v1728 = vsel %vm535, %v1697, 0
        %v1731 = vsel %vm535, %v1698, 0
        %v1734 = vsel %vm535, %v1699, 0
        %v1737 = vsel %vm535, %v1700, 0
        %v1740 = vsel %vm535, %v1701, 0
        %v1743 = vsel %vm535, %v1702, 0
        %v1746 = vsel %vm535, %v1703, 0
        %v1749 = vsel %vm535, %v1704, 0
        %v1752 = vsel %vm535, %v1705, 0
        %1754 = vmatprep.subr.bf16.mxu0 0
        %1755 = vmatpush1.bf16.msra.mxu0 %v1591
        %1756 = vmatprep.subr.bf16.mxu0 0
        %1757 = vmatpush1.bf16.msra.mxu0 %v1592
        %1758 = vmatprep.subr.bf16.mxu0 0
        %1759 = vmatpush1.bf16.msra.mxu0 0
        %1760 = vmatprep.subr.bf16.mxu0 0
        %1761 = vmatpush1.bf16.msra.mxu0 0
        %1762 = vmatprep.subr.bf16.mxu0 0
        %1763 = vmatpush1.bf16.msra.mxu0 0
        %1764 = vmatprep.subr.bf16.mxu0 0
        %1765 = vmatpush1.bf16.msra.mxu0 0
        %1766 = vmatprep.subr.bf16.mxu0 0
        %1767 = vmatpush1.bf16.msra.mxu0 0
        %1768 = vmatprep.subr.bf16.mxu0 0
        %1769 = vmatpush1.bf16.msra.mxu0 0
        %1770 = vmatprep.subr.bf16.mxu0 0
        %1771 = vmatpush1.bf16.msra.mxu0 0
        %1772 = vmatprep.subr.bf16.mxu0 0
        %1773 = vmatpush1.bf16.msra.mxu0 0
        %1774 = vmatprep.subr.bf16.mxu0 0
        %1775 = vmatpush1.bf16.msra.mxu0 0
        %1776 = vmatprep.subr.bf16.mxu0 0
        %1777 = vmatpush1.bf16.msra.mxu0 0
        %1778 = vmatprep.subr.bf16.mxu0 0
        %1779 = vmatpush1.bf16.msra.mxu0 0
        %1780 = vmatprep.subr.bf16.mxu0 0
        %1781 = vmatpush1.bf16.msra.mxu0 0
        %1782 = vmatprep.subr.bf16.mxu0 0
        %1783 = vmatpush1.bf16.msra.mxu0 0
        %1784 = vmatprep.subr.bf16.mxu0 0
        %1785 = vmatpush1.bf16.msra.mxu0 0
        %1786 = vmatprep.mubr.bf16.mxu0 0
        %1787 = vmatmul.mubr.bf16.gmra.mrb[0].mxu0 %v1707
        %v1788 = vpop.f32.mrb[0].mxu0
        %v1789 = vadd.f32 0.0, %v1788
        %v1790 = vpop.f32.mrb[0].mxu0
        %v1791 = vpop.f32.mrb[0].mxu0
        %v1792 = vadd.f32 0.0, %v1791
        %v1793 = vpop.f32.mrb[0].mxu0
        %1794 = vmatprep.mubr.bf16.mxu0 0
        %1795 = vmatmul.mubr.bf16.gmra.mrb[0].mxu0 %v1710
        %v1796 = vpop.f32.mrb[0].mxu0
        %v1797 = vadd.f32 0.0, %v1796
        %v1798 = vpop.f32.mrb[0].mxu0
        %v1799 = vpop.f32.mrb[0].mxu0
        %v1800 = vadd.f32 0.0, %v1799
        %v1801 = vpop.f32.mrb[0].mxu0
        %1802 = vmatprep.mubr.bf16.mxu0 0
        %1803 = vmatmul.mubr.bf16.gmra.mrb[0].mxu0 %v1713
        %v1804 = vpop.f32.mrb[0].mxu0
        %v1805 = vadd.f32 0.0, %v1804
        %v1806 = vpop.f32.mrb[0].mxu0
        %v1807 = vpop.f32.mrb[0].mxu0
        %v1808 = vadd.f32 0.0, %v1807
        %v1809 = vpop.f32.mrb[0].mxu0
        %1810 = vmatprep.mubr.bf16.mxu0 0
        %1811 = vmatmul.mubr.bf16.gmra.mrb[0].mxu0 %v1716
        %v1812 = vpop.f32.mrb[0].mxu0
        %v1813 = vadd.f32 0.0, %v1812
        %v1814 = vpop.f32.mrb[0].mxu0
        %v1815 = vpop.f32.mrb[0].mxu0
        %v1816 = vadd.f32 0.0, %v1815
        %v1817 = vpop.f32.mrb[0].mxu0
        %1818 = vmatprep.mubr.bf16.mxu0 0
        %1819 = vmatmul.mubr.bf16.gmra.mrb[0].mxu0 %v1719
        %v1820 = vpop.f32.mrb[0].mxu0
        %v1821 = vadd.f32 0.0, %v1820
        %v1822 = vpop.f32.mrb[0].mxu0
        %v1823 = vpop.f32.mrb[0].mxu0
        %v1824 = vadd.f32 0.0, %v1823
        %v1825 = vpop.f32.mrb[0].mxu0
        %1826 = vmatprep.mubr.bf16.mxu0 0
        %1827 = vmatmul.mubr.bf16.gmra.mrb[0].mxu0 %v1722
        %v1828 = vpop.f32.mrb[0].mxu0
        %v1829 = vadd.f32 0.0, %v1828
        %v1830 = vpop.f32.mrb[0].mxu0
        %v1831 = vpop.f32.mrb[0].mxu0
        %v1832 = vadd.f32 0.0, %v1831
        %v1833 = vpop.f32.mrb[0].mxu0
        %1834 = vmatprep.mubr.bf16.mxu0 0
        %1835 = vmatmul.mubr.bf16.gmra.mrb[0].mxu0 %v1725
        %v1836 = vpop.f32.mrb[0].mxu0
        %v1837 = vadd.f32 0.0, %v1836
        %v1838 = vpop.f32.mrb[0].mxu0
        %v1839 = vpop.f32.mrb[0].mxu0
        %v1840 = vadd.f32 0.0, %v1839
        %v1841 = vpop.f32.mrb[0].mxu0
        %1842 = vmatprep.mubr.bf16.mxu0 0
        %1843 = vmatmul.mubr.bf16.gmra.mrb[0].mxu0 %v1728
        %v1844 = vpop.f32.mrb[0].mxu0
        %v1845 = vadd.f32 0.0, %v1844
        %v1846 = vpop.f32.mrb[0].mxu0
        %v1847 = vpop.f32.mrb[0].mxu0
        %v1848 = vadd.f32 0.0, %v1847
        %v1849 = vpop.f32.mrb[0].mxu0
        %1850 = vmatprep.mubr.bf16.mxu0 0
        %1851 = vmatmul.mubr.bf16.gmra.mrb[0].mxu0 %v1731
        %v1852 = vpop.f32.mrb[0].mxu0
        %v1853 = vadd.f32 0.0, %v1852
        %v1854 = vpop.f32.mrb[0].mxu0
        %v1855 = vpop.f32.mrb[0].mxu0
        %v1856 = vadd.f32 0.0, %v1855
        %v1857 = vpop.f32.mrb[0].mxu0
        %1858 = vmatprep.mubr.bf16.mxu0 0
        %1859 = vmatmul.mubr.bf16.gmra.mrb[0].mxu0 %v1734
        %v1860 = vpop.f32.mrb[0].mxu0
        %v1861 = vadd.f32 0.0, %v1860
        %v1862 = vpop.f32.mrb[0].mxu0
        %v1863 = vpop.f32.mrb[0].mxu0
        %v1864 = vadd.f32 0.0, %v1863
        %v1865 = vpop.f32.mrb[0].mxu0
        %1866 = vmatprep.mubr.bf16.mxu0 0
        %1867 = vmatmul.mubr.bf16.gmra.mrb[0].mxu0 %v1737
        %v1868 = vpop.f32.mrb[0].mxu0
        %v1869 = vadd.f32 0.0, %v1868
        %v1870 = vpop.f32.mrb[0].mxu0
        %v1871 = vpop.f32.mrb[0].mxu0
        %v1872 = vadd.f32 0.0, %v1871
        %v1873 = vpop.f32.mrb[0].mxu0
        %1874 = vmatprep.mubr.bf16.mxu0 0
        %1875 = vmatmul.mubr.bf16.gmra.mrb[0].mxu0 %v1740
        %v1876 = vpop.f32.mrb[0].mxu0
        %v1877 = vadd.f32 0.0, %v1876
        %v1878 = vpop.f32.mrb[0].mxu0
        %v1879 = vpop.f32.mrb[0].mxu0
        %v1880 = vadd.f32 0.0, %v1879
        %v1881 = vpop.f32.mrb[0].mxu0
        %1882 = vmatprep.mubr.bf16.mxu0 0
        %1883 = vmatmul.mubr.bf16.gmra.mrb[0].mxu0 %v1743
        %v1884 = vpop.f32.mrb[0].mxu0
        %v1885 = vadd.f32 0.0, %v1884
        %v1886 = vpop.f32.mrb[0].mxu0
        %v1887 = vpop.f32.mrb[0].mxu0
        %v1888 = vadd.f32 0.0, %v1887
        %v1889 = vpop.f32.mrb[0].mxu0
        %1890 = vmatprep.mubr.bf16.mxu0 0
        %1891 = vmatmul.mubr.bf16.gmra.mrb[0].mxu0 %v1746
        %v1892 = vpop.f32.mrb[0].mxu0
        %v1893 = vadd.f32 0.0, %v1892
        %v1894 = vpop.f32.mrb[0].mxu0
        %v1895 = vpop.f32.mrb[0].mxu0
        %v1896 = vadd.f32 0.0, %v1895
        %v1897 = vpop.f32.mrb[0].mxu0
        %1898 = vmatprep.mubr.bf16.mxu0 0
        %1899 = vmatmul.mubr.bf16.gmra.mrb[0].mxu0 %v1749
        %v1900 = vpop.f32.mrb[0].mxu0
        %v1901 = vadd.f32 0.0, %v1900
        %v1902 = vpop.f32.mrb[0].mxu0
        %v1903 = vpop.f32.mrb[0].mxu0
        %v1904 = vadd.f32 0.0, %v1903
        %v1905 = vpop.f32.mrb[0].mxu0
        %1906 = vmatprep.mubr.bf16.mxu0 0
        %1907 = vmatmul.mubr.bf16.gmra.mrb[0].mxu0 %v1752
        %v1908 = vpop.f32.mrb[0].mxu0
        %v1909 = vadd.f32 0.0, %v1908
        %v1910 = vpop.f32.mrb[0].mxu0
        %v1911 = vpop.f32.mrb[0].mxu0
        %v1912 = vadd.f32 0.0, %v1911
        %v1913 = vpop.f32.mrb[0].mxu0
        %1914 = vdwg.mxu0
        %v1915 = vpack.c.bf16 %v1792, %v1789
        %v1916 = vpack.c.bf16 %v1800, %v1797
        %v1917 = vpack.c.bf16 %v1808, %v1805
        %v1918 = vpack.c.bf16 %v1816, %v1813
        %v1919 = vpack.c.bf16 %v1824, %v1821
        %v1920 = vpack.c.bf16 %v1832, %v1829
        %v1921 = vpack.c.bf16 %v1840, %v1837
        %v1922 = vpack.c.bf16 %v1848, %v1845
        %1923 = vmatprep.subr.bf16.mxu0 0
        %1924 = vmatpush1.bf16.msra.mxu0 %v785
        %1925 = vmatprep.subr.bf16.mxu0 0
        %1926 = vmatpush1.bf16.msra.mxu0 %v786
        %1927 = vmatprep.subr.bf16.mxu0 0
        %1928 = vmatpush1.bf16.msra.mxu0 %v787
        %1929 = vmatprep.subr.bf16.mxu0 0
        %1930 = vmatpush1.bf16.msra.mxu0 %v788
        %1931 = vmatprep.subr.bf16.mxu0 0
        %1932 = vmatpush1.bf16.msra.mxu0 %v789
        %1933 = vmatprep.subr.bf16.mxu0 0
        %1934 = vmatpush1.bf16.msra.mxu0 %v790
        %1935 = vmatprep.subr.bf16.mxu0 0
        %1936 = vmatpush1.bf16.msra.mxu0 %v791
        %1937 = vmatprep.subr.bf16.mxu0 0
        %1938 = vmatpush1.bf16.msra.mxu0 %v792
        %1939 = vmatprep.subr.bf16.mxu0 0
        %1940 = vmatpush1.bf16.msra.mxu0 0
        %1941 = vmatprep.subr.bf16.mxu0 0
        %1942 = vmatpush1.bf16.msra.mxu0 0
        %1943 = vmatprep.subr.bf16.mxu0 0
        %1944 = vmatpush1.bf16.msra.mxu0 0
        %1945 = vmatprep.subr.bf16.mxu0 0
        %1946 = vmatpush1.bf16.msra.mxu0 0
        %1947 = vmatprep.subr.bf16.mxu0 0
        %1948 = vmatpush1.bf16.msra.mxu0 0
        %1949 = vmatprep.subr.bf16.mxu0 0
        %1950 = vmatpush1.bf16.msra.mxu0 0
        %1951 = vmatprep.subr.bf16.mxu0 0
        %1952 = vmatpush1.bf16.msra.mxu0 0
        %1953 = vmatprep.subr.bf16.mxu0 0
        %1954 = vmatpush1.bf16.msra.mxu0 0
        %1955 = vmatprep.mubr.bf16.mxu0 0
        %1956 = vmatmul.mubr.bf16.gmra.mrb[0].mxu0 %v1915
        %v1957 = vpop.f32.mrb[0].mxu0
        %v1958 = vadd.f32 %v1853, %v1957
        %v1959 = vpop.f32.mrb[0].mxu0
        %v1960 = vpop.f32.mrb[0].mxu0
        %v1961 = vadd.f32 %v1856, %v1960
        %v1962 = vpop.f32.mrb[0].mxu0
        %1963 = vmatprep.mubr.bf16.mxu0 0
        %1964 = vmatmul.mubr.bf16.gmra.mrb[0].mxu0 %v1916
        %v1965 = vpop.f32.mrb[0].mxu0
        %v1966 = vadd.f32 %v1861, %v1965
        %v1967 = vpop.f32.mrb[0].mxu0
        %v1968 = vpop.f32.mrb[0].mxu0
        %v1969 = vadd.f32 %v1864, %v1968
        %v1970 = vpop.f32.mrb[0].mxu0
        %1971 = vmatprep.mubr.bf16.mxu0 0
        %1972 = vmatmul.mubr.bf16.gmra.mrb[0].mxu0 %v1917
        %v1973 = vpop.f32.mrb[0].mxu0
        %v1974 = vadd.f32 %v1869, %v1973
        %v1975 = vpop.f32.mrb[0].mxu0
        %v1976 = vpop.f32.mrb[0].mxu0
        %v1977 = vadd.f32 %v1872, %v1976
        %v1978 = vpop.f32.mrb[0].mxu0
        %1979 = vmatprep.mubr.bf16.mxu0 0
        %1980 = vmatmul.mubr.bf16.gmra.mrb[0].mxu0 %v1918
        %v1981 = vpop.f32.mrb[0].mxu0
        %v1982 = vadd.f32 %v1877, %v1981
        %v1983 = vpop.f32.mrb[0].mxu0
        %v1984 = vpop.f32.mrb[0].mxu0
        %v1985 = vadd.f32 %v1880, %v1984
        %v1986 = vpop.f32.mrb[0].mxu0
        %1987 = vmatprep.mubr.bf16.mxu0 0
        %1988 = vmatmul.mubr.bf16.gmra.mrb[0].mxu0 %v1919
        %v1989 = vpop.f32.mrb[0].mxu0
        %v1990 = vadd.f32 %v1885, %v1989
        %v1991 = vpop.f32.mrb[0].mxu0
        %v1992 = vpop.f32.mrb[0].mxu0
        %v1993 = vadd.f32 %v1888, %v1992
        %v1994 = vpop.f32.mrb[0].mxu0
        %1995 = vmatprep.mubr.bf16.mxu0 0
        %1996 = vmatmul.mubr.bf16.gmra.mrb[0].mxu0 %v1920
        %v1997 = vpop.f32.mrb[0].mxu0
        %v1998 = vadd.f32 %v1893, %v1997
        %v1999 = vpop.f32.mrb[0].mxu0
        %v2000 = vpop.f32.mrb[0].mxu0
        %v2001 = vadd.f32 %v1896, %v2000
        %v2002 = vpop.f32.mrb[0].mxu0
        %2003 = vmatprep.mubr.bf16.mxu0 0
        %2004 = vmatmul.mubr.bf16.gmra.mrb[0].mxu0 %v1921
        %v2005 = vpop.f32.mrb[0].mxu0
        %v2006 = vadd.f32 %v1901, %v2005
        %v2007 = vpop.f32.mrb[0].mxu0
        %v2008 = vpop.f32.mrb[0].mxu0
        %v2009 = vadd.f32 %v1904, %v2008
        %v2010 = vpop.f32.mrb[0].mxu0
        %2011 = vmatprep.mubr.bf16.mxu0 0
        %2012 = vmatmul.mubr.bf16.gmra.mrb[0].mxu0 %v1922
        %v2013 = vpop.f32.mrb[0].mxu0
        %v2014 = vadd.f32 %v1909, %v2013
        %v2015 = vpop.f32.mrb[0].mxu0
        %v2016 = vpop.f32.mrb[0].mxu0
        %v2017 = vadd.f32 %v1912, %v2016
        %v2018 = vpop.f32.mrb[0].mxu0
        %2019 = vdwg.mxu0
        %v2020 = vadd.f32 %v1958, %v901
        %v2021 = vadd.f32 %v1961, %v906
        %v2022 = vadd.f32 %v1966, %v911
        %v2023 = vadd.f32 %v1969, %v916
        %v2024 = vadd.f32 %v1974, %v921
        %v2025 = vadd.f32 %v1977, %v926
        %v2026 = vadd.f32 %v1982, %v931
        %v2027 = vadd.f32 %v1985, %v936
        %v2028 = vadd.f32 %v1990, %v941
        %v2029 = vadd.f32 %v1993, %v946
        %v2030 = vadd.f32 %v1998, %v951
        %v2031 = vadd.f32 %v2001, %v956
        %v2032 = vadd.f32 %v2006, %v961
        %v2033 = vadd.f32 %v2009, %v966
        %v2034 = vadd.f32 %v2014, %v971
        %v2035 = vadd.f32 %v2017, %v976
        %v2036 = vxor.u32 %v2020, 2147483648
        %v2037 = vxor.u32 %v2021, 2147483648
        %v2038 = vxor.u32 %v2022, 2147483648
        %v2039 = vxor.u32 %v2023, 2147483648
        %v2040 = vxor.u32 %v2024, 2147483648
        %v2041 = vxor.u32 %v2025, 2147483648
        %v2042 = vxor.u32 %v2026, 2147483648
        %v2043 = vxor.u32 %v2027, 2147483648
        %v2044 = vmul.f32 %v2036, 1.442695
        %v2045 = vpow.pop %v2044
        %v2046 = vmul.f32 %v2037, 1.442695
        %v2047 = vpow.pop %v2046
        %v2048 = vmul.f32 %v2038, 1.442695
        %v2049 = vpow.pop %v2048
        %v2050 = vmul.f32 %v2039, 1.442695
        %v2051 = vpow.pop %v2050
        %v2052 = vmul.f32 %v2040, 1.442695
        %v2053 = vpow.pop %v2052
        %v2054 = vmul.f32 %v2041, 1.442695
        %v2055 = vpow.pop %v2054
        %v2056 = vmul.f32 %v2042, 1.442695
        %v2057 = vpow.pop %v2056
        %v2058 = vmul.f32 %v2043, 1.442695
        %v2059 = vpow.pop %v2058
        %v2060 = vadd.f32 %v2045, 1.0
        %v2061 = vadd.f32 %v2047, 1.0
        %v2062 = vadd.f32 %v2049, 1.0
        %v2063 = vadd.f32 %v2051, 1.0
        %v2064 = vadd.f32 %v2053, 1.0
        %v2065 = vadd.f32 %v2055, 1.0
        %v2066 = vadd.f32 %v2057, 1.0
        %v2067 = vadd.f32 %v2059, 1.0
        %v2068 = vrcp.pop %v2060
        %v2069 = vmul.f32 1.0, %v2068
        %v2070 = vrcp.pop %v2061
        %v2071 = vmul.f32 1.0, %v2070
        %v2072 = vrcp.pop %v2062
        %v2073 = vmul.f32 1.0, %v2072
        %v2074 = vrcp.pop %v2063
        %v2075 = vmul.f32 1.0, %v2074
        %v2076 = vrcp.pop %v2064
        %v2077 = vmul.f32 1.0, %v2076
        %v2078 = vrcp.pop %v2065
        %v2079 = vmul.f32 1.0, %v2078
        %v2080 = vrcp.pop %v2066
        %v2081 = vmul.f32 1.0, %v2080
        %v2082 = vrcp.pop %v2067
        %v2083 = vmul.f32 1.0, %v2082
        %v2084 = vmul.f32 %v2069, %v2032
        %v2085 = vmul.f32 %v2071, %v2033
        %v2086 = vmul.f32 %v2073, %v2034
        %v2087 = vmul.f32 %v2075, %v2035
        %v2088 = vadd.f32 %v2028, %v2084
        %v2089 = vadd.f32 %v2029, %v2085
        %v2090 = vadd.f32 %v2030, %v2086
        %v2091 = vadd.f32 %v2031, %v2087
        %v2092 = vtanh.pop %v2088
        %v2093 = vtanh.pop %v2089
        %v2094 = vtanh.pop %v2090
        %v2095 = vtanh.pop %v2091
        %v2096 = vsub.f32 1.0, %v2077
        %v2097 = vsub.f32 1.0, %v2079
        %v2098 = vsub.f32 1.0, %v2081
        %v2099 = vsub.f32 1.0, %v2083
        %v2100 = vmul.f32 %v2096, %v2092
        %v2101 = vmul.f32 %v2097, %v2093
        %v2102 = vmul.f32 %v2098, %v2094
        %v2103 = vmul.f32 %v2099, %v2095
        %v2104 = vmul.f32 %v2077, %v1587
        %v2105 = vmul.f32 %v2079, %v1588
        %v2106 = vmul.f32 %v2081, %v1589
        %v2107 = vmul.f32 %v2083, %v1590
        %v2108 = vadd.f32 %v2100, %v2104
        %v2109 = vadd.f32 %v2101, %v2105
        %v2110 = vadd.f32 %v2102, %v2106
        %v2111 = vadd.f32 %v2103, %v2107
        %2112 = vst [vmem:[%s259] sm:$0xff] %v2108
        %2113 = vst [vmem:[%s259 + $0x8] sm:$0xff] %v2109
        %2114 = vst [vmem:[%s259 + $0x10] sm:$0xff] %v2110
        %2115 = vst [vmem:[%s259 + $0x18] sm:$0xff] %v2111
        %s2116 = sand.u32 %s164, 1
        %s2117 = scalar_lea.sflag [#allocation3], %s2116
        %s2118 = sand.u32 %s164, 1
        %s2119 = smul.addr %s2118, 32
        %s2120 = scalar_lea.vmem [#allocation2], %s2119
        // Predicated region
        $region45: #{tpu_custom_call.1} parent=43 // pred_check
          %p2121 = pneg %p174
        $region46: #{tpu_custom_call.1} parent=43 // pred_check_branch
          %2123 = sbr.rel (%p2121) target = $region48
        $region47: #{tpu_custom_call.1} parent=43 // pred_region
          %s2125 = ssub.s32 512, 512
          %2126 = vsyncadd %s2117, %s2125
          %s2127 = smul.addr %s20, 4
          %s2128 = smul.addr %s2127, 128
          %s2129 = scalar_lea.hbm %s6, %s2128
          %s2130 = sshll.u32 %s2120, 4
          %s2131 = int_to_ptr.vmem [resolvable:$true] %s2130
          %2136 = dma.vmem_to_hbm [thread:$0]  %s2131, 512, %s2129, %s2117, 128, 128, 8
        $region48: #{tpu_custom_call.1} parent=43 // pred_fallthru
          _
      $region44: #{tpu_custom_call.1} parent=5 // pred_fallthru
        _
      %p2137 = scmp.le.s32.totalorder 2, %s15
      // Predicated region
      $region49: #{tpu_custom_call.1} parent=5 // pred_check
        %p2138 = pneg %p2137
      $region50: #{tpu_custom_call.1} parent=5 // pred_check_branch
        %2140 = sbr.rel (%p2138) target = $region52
      $region51: #{tpu_custom_call.1} parent=5 // pred_region
        %s2141 = ssub.s32 %s15, 2
        // Predicated region
        $region53: #{tpu_custom_call.1} parent=51 // pred_check
          %p2142 = pneg %p180
        $region54: #{tpu_custom_call.1} parent=51 // pred_check_branch
          %2144 = sbr.rel (%p2142) target = $region56
        $region55: #{tpu_custom_call.1} parent=51 // pred_region
          %s2145 = sand.u32 %s165, 1
          %s2146 = scalar_lea.sflag [#allocation3], %s2145
          %s2147 = sand.u32 %s165, 1
          %s2148 = smul.addr %s2147, 32
          %s2149 = scalar_lea.vmem [#allocation2], %s2148
          %2150 = dma.done %s2146, 512
        $region56: #{tpu_custom_call.1} parent=51 // pred_fallthru
          _
      $region52: #{tpu_custom_call.1} parent=5 // pred_fallthru
        _
    $region6: #{tpu_custom_call.1} parent=1 // loop_footer
      %s19 = sadd.s32 1, %s15
    $region7: #{tpu_custom_call.1} parent=1 // loop_footer_branch
      %14 = sbr.rel target = $region3
    $region8: #{tpu_custom_call.1} parent=1 // loop_exit
      _
    %2151 = vsyncpa [#allocation3], 1
    %s2152 = scalar_lea.sflag [#allocation3], 1
    %2153 = vsyncpa %s2152, 1

</llo_original>
